<compile_context>
chip_gen: v7x
topology: tpu7x:2x2x1
jax: 0.10.0
libtpu: 0.0.40
codegen_flags: <defaults>
</compile_context>

<pallas_src>
import jax
import jax.numpy as jnp
from jax.experimental import pallas as pl
from jax.experimental.pallas import tpu as pltpu

FEAT_DIM = 256
D_HIDDEN = 256
N_LAYERS = 4
N_FREQS = 3                      # SH levels -> 9 encoded dims
SH_DIM = N_FREQS ** 2
D_SMALL = 3 + SH_DIM + 3         # x(3) + sh(9) + n(3) = 15
D_SMALL_PAD = 16                 # one zero lane -> (N, 16) small-feature slab
D_IN = D_SMALL + FEAT_DIM        # 271
D_OUT = 3
D_OUT_PAD = 8                    # lane-pad output to 8; slice to 3 in wrapper
TM_MAX = 1024                    # target rows per grid step


def spherical_encoding(v):
    # Real spherical harmonics, degrees 0..2 (levels=3), of the view dir.
    # TODO(synk): SphericalEncoder source not provided; standard real-SH basis assumed.
    x, y, z = v[..., 0], v[..., 1], v[..., 2]
    return jnp.stack(
        [
            0.28209479177387814 * jnp.ones_like(x),
            -0.4886025119029199 * y,
            0.4886025119029199 * z,
            -0.4886025119029199 * x,
            1.0925484305920792 * x * y,
            -1.0925484305920792 * y * z,
            0.31539156525252005 * (2.0 * z * z - x * x - y * y),
            -1.0925484305920792 * x * z,
            0.5462742152960396 * (x * x - y * y),
        ],
        axis=-1,
    )


def color_mlp_kernel(s_ref, z_ref, w0s, w0z, b0,
                     w1, b1, w2, b2, w3, b3, w4, b4, out_ref):
    """5 linear layers (ReLU between), sigmoid output.

    Layer 0 is split: small (x,sh,n) features (16 lanes, f32) + z (256, bf16).
    Hidden matmuls are bf16 on the MXU with f32 accumulation; the per-layer
    bias+ReLU epilogue runs in bf16 after a single cast. Final layer and
    sigmoid run in f32 (only 8 output lanes, negligible cost).
    """
    zb = z_ref[...].astype(jnp.bfloat16)
    h32 = (jnp.dot(s_ref[...], w0s[...], preferred_element_type=jnp.float32)
           + jnp.dot(zb, w0z[...], preferred_element_type=jnp.float32))
    h = jnp.maximum(h32.astype(jnp.bfloat16) + b0[...], 0)
    h = jnp.maximum(
        jnp.dot(h, w1[...], preferred_element_type=jnp.float32).astype(jnp.bfloat16)
        + b1[...], 0)
    h = jnp.maximum(
        jnp.dot(h, w2[...], preferred_element_type=jnp.float32).astype(jnp.bfloat16)
        + b2[...], 0)
    h = jnp.maximum(
        jnp.dot(h, w3[...], preferred_element_type=jnp.float32).astype(jnp.bfloat16)
        + b3[...], 0)
    o = jnp.dot(h, w4[...], preferred_element_type=jnp.float32) + b4[...]
    # sigmoid(o) = 1 / (1 + exp(-o)); exp + approx reciprocal both live on the EUP.
    out_ref[...] = pl.reciprocal(1.0 + jnp.exp(-o), approx=True)


def init_params(key):
    """Deterministic synthetic init (Kaiming-ish); weight_norm is a no-op at fwd.

    TODO(synk): when loading a real checkpoint, fold g/||v|| into w here so the
    effective weight matches the weight-normed PyTorch module.
    """
    dims = [D_IN] + [D_HIDDEN] * N_LAYERS + [D_OUT]
    params = []
    for i in range(len(dims) - 1):
        key, k = jax.random.split(key)
        w = jax.random.normal(k, (dims[i], dims[i + 1]), jnp.float32) * jnp.sqrt(2.0 / dims[i])
        b = jnp.zeros((dims[i + 1],), jnp.float32)
        params.append((w, b))
    return params


def prepare_params(params):
    """One-time prep: split/pad layer-0, pad layer-4, cast hidden weights to bf16."""
    (w0, b0), (w1, b1), (w2, b2), (w3, b3), (w4, b4) = params
    # small path stays f32 (raw coords / SH / normals keep full precision)
    w0s = (jnp.zeros((D_SMALL_PAD, D_HIDDEN), jnp.float32)
           .at[:D_SMALL].set(w0[:D_SMALL]))                       # (16, 256) f32
    w0z = w0[D_SMALL:].astype(jnp.bfloat16)                       # (256, 256) bf16
    w4p = (jnp.zeros((D_HIDDEN, D_OUT_PAD), jnp.float32)
           .at[:, :D_OUT].set(w4)).astype(jnp.bfloat16)           # (256, 8) bf16
    b4p = jnp.zeros((1, D_OUT_PAD), jnp.float32).at[0, :D_OUT].set(b4)
    rb = lambda b: b.reshape(1, -1).astype(jnp.bfloat16)          # bf16 epilogue biases
    return dict(
        w0s=w0s, w0z=w0z, b0=rb(b0),
        w1=w1.astype(jnp.bfloat16), b1=rb(b1),
        w2=w2.astype(jnp.bfloat16), b2=rb(b2),
        w3=w3.astype(jnp.bfloat16), b3=rb(b3),
        w4=w4p, b4=b4p)


def _choose_tm(n_rows):
    """Large row tiles amortize the ~0.35us per-grid-step overhead, but keep at
    least 2 row blocks when possible so v7x can shard across both TensorCores."""
    tm = TM_MAX
    while tm > 8 and -(-n_rows // tm) < 2:
        tm //= 2
    return tm


@jax.jit
def color_network_forward(x, v, n, z, prep):
    N = x.shape[0]
    sh = spherical_encoding(v)
    # (N, 16) small-feature slab: x(3) + sh(9) + n(3) + 1 zero lane. f32.
    small = jnp.concatenate(
        [x, sh, n, jnp.zeros((N, D_SMALL_PAD - D_SMALL), x.dtype)],
        axis=-1).astype(jnp.float32)
    z = z.astype(jnp.float32)            # passed straight through; bf16 cast in-kernel

    tm = _choose_tm(N)
    grid = (pl.cdiv(N, tm),)             # ragged last block: pad rows are garbage,
                                         # independent, and never read back.

    full = lambda shape: pl.BlockSpec(shape, lambda i: (0, 0))

    flops_per_row = 2 * (D_SMALL_PAD * D_HIDDEN
                         + N_LAYERS * D_HIDDEN * D_HIDDEN      # layer-0 z + 3 hidden
                         + D_HIDDEN * D_OUT_PAD)
    weight_bytes = (D_SMALL_PAD * D_HIDDEN * 4
                    + 4 * D_HIDDEN * D_HIDDEN * 2
                    + D_HIDDEN * D_OUT_PAD * 2
                    + 4 * D_HIDDEN * 2 + D_OUT_PAD * 4)
    cost = pl.CostEstimate(
        flops=N * flops_per_row,
        transcendentals=N * D_OUT_PAD,
        bytes_accessed=(N * (D_SMALL_PAD + FEAT_DIM) * 4       # f32 inputs
                        + weight_bytes
                        + N * D_OUT_PAD * 4))                  # f32 output

    out = pl.pallas_call(
        color_mlp_kernel,
        out_shape=jax.ShapeDtypeStruct((N, D_OUT_PAD), jnp.float32),
        grid_spec=pltpu.PrefetchScalarGridSpec(
            num_scalar_prefetch=0,
            grid=grid,
            in_specs=[
                pl.BlockSpec((tm, D_SMALL_PAD), lambda i: (i, 0)),   # small features
                pl.BlockSpec((tm, FEAT_DIM), lambda i: (i, 0)),      # z
                full((D_SMALL_PAD, D_HIDDEN)),                       # w0s (f32)
                full((D_HIDDEN, D_HIDDEN)), full((1, D_HIDDEN)),     # w0z, b0
                full((D_HIDDEN, D_HIDDEN)), full((1, D_HIDDEN)),     # w1, b1
                full((D_HIDDEN, D_HIDDEN)), full((1, D_HIDDEN)),     # w2, b2
                full((D_HIDDEN, D_HIDDEN)), full((1, D_HIDDEN)),     # w3, b3
                full((D_HIDDEN, D_OUT_PAD)), full((1, D_OUT_PAD)),   # w4, b4
            ],
            out_specs=pl.BlockSpec((tm, D_OUT_PAD), lambda i: (i, 0)),
        ),
        compiler_params=pltpu.CompilerParams(
            dimension_semantics=("parallel",)),   # row blocks are independent
        cost_estimate=cost,
    )(small, z,
      prep["w0s"], prep["w0z"], prep["b0"],
      prep["w1"], prep["b1"], prep["w2"], prep["b2"],
      prep["w3"], prep["b3"], prep["w4"], prep["b4"])

    return out[:, :D_OUT]


def reference_forward(x, v, n, z, params):
    h = jnp.concatenate([x, spherical_encoding(v), n, z], axis=-1)
    for i, (w, b) in enumerate(params):
        h = jnp.dot(h, w, preferred_element_type=jnp.float32) + b
        if i < len(params) - 1:
            h = jnp.maximum(h, 0.0)
    return jax.nn.sigmoid(h)


if __name__ == "__main__":
    key = jax.random.PRNGKey(0)
    kx, kv, kn, kz, kp = jax.random.split(key, 5)

    N = 16
    x = jax.random.normal(kx, (N, 3), jnp.float32)
    v = jax.random.normal(kv, (N, 3), jnp.float32)
    v = v / jnp.linalg.norm(v, axis=-1, keepdims=True)
    nrm = jax.random.normal(kn, (N, 3), jnp.float32)
    nrm = nrm / jnp.linalg.norm(nrm, axis=-1, keepdims=True)
    z = jax.random.normal(kz, (N, FEAT_DIM), jnp.float32)

    params = init_params(kp)
    prep = prepare_params(params)          # one-time split/padded/bf16 weights

    rgb = color_network_forward(x, v, nrm, z, prep)
    rgb = jax.block_until_ready(rgb)

    ref = reference_forward(x, v, nrm, z, params)   # f32 reference
    assert rgb.shape == (N, D_OUT)
    assert bool(jnp.all(jnp.isfinite(rgb)))
    # bf16 hidden matmuls (f32 accumulation) + approx-recip sigmoid: small tolerance
    assert float(jnp.max(jnp.abs(rgb - ref))) < 3e-2

    print("KERNEL_OK")
</pallas_src>

<mosaic_0001>
module attributes {stable_mosaic.version = 11 : i64} {
  func.func @color_mlp_kernel(%arg0: i32, %arg1: memref<8x16xf32, #tpu.memory_space<vmem>>, %arg2: memref<8x256xf32, #tpu.memory_space<vmem>>, %arg3: memref<16x256xf32, #tpu.memory_space<vmem>>, %arg4: memref<256x256xbf16, #tpu.memory_space<vmem>>, %arg5: memref<1x256xbf16, #tpu.memory_space<vmem>>, %arg6: memref<256x256xbf16, #tpu.memory_space<vmem>>, %arg7: memref<1x256xbf16, #tpu.memory_space<vmem>>, %arg8: memref<256x256xbf16, #tpu.memory_space<vmem>>, %arg9: memref<1x256xbf16, #tpu.memory_space<vmem>>, %arg10: memref<256x256xbf16, #tpu.memory_space<vmem>>, %arg11: memref<1x256xbf16, #tpu.memory_space<vmem>>, %arg12: memref<256x8xbf16, #tpu.memory_space<vmem>>, %arg13: memref<1x8xf32, #tpu.memory_space<vmem>>, %arg14: memref<8x8xf32, #tpu.memory_space<vmem>>) attributes {dimension_semantics = [#tpu.dimension_semantics<parallel>], iteration_bounds = array<i64: 2>, scalar_prefetch = 0 : i64, scratch_operands = 0 : i64, tpu.core_type = #tpu.core_type<tc>, window_params = [{transform_indices = @transform_0, window_bounds = array<i64: 8, 16>}, {transform_indices = @transform_1, window_bounds = array<i64: 8, 256>}, {pipeline_mode = #tpu.pipeline_mode<synchronous>, transform_indices = @transform_2, window_bounds = array<i64: 16, 256>}, {pipeline_mode = #tpu.pipeline_mode<synchronous>, transform_indices = @transform_3, window_bounds = array<i64: 256, 256>}, {pipeline_mode = #tpu.pipeline_mode<synchronous>, transform_indices = @transform_4, window_bounds = array<i64: 1, 256>}, {pipeline_mode = #tpu.pipeline_mode<synchronous>, transform_indices = @transform_5, window_bounds = array<i64: 256, 256>}, {pipeline_mode = #tpu.pipeline_mode<synchronous>, transform_indices = @transform_6, window_bounds = array<i64: 1, 256>}, {pipeline_mode = #tpu.pipeline_mode<synchronous>, transform_indices = @transform_7, window_bounds = array<i64: 256, 256>}, {pipeline_mode = #tpu.pipeline_mode<synchronous>, transform_indices = @transform_8, window_bounds = array<i64: 1, 256>}, {pipeline_mode = #tpu.pipeline_mode<synchronous>, transform_indices = @transform_9, window_bounds = array<i64: 256, 256>}, {pipeline_mode = #tpu.pipeline_mode<synchronous>, transform_indices = @transform_10, window_bounds = array<i64: 1, 256>}, {pipeline_mode = #tpu.pipeline_mode<synchronous>, transform_indices = @transform_11, window_bounds = array<i64: 256, 8>}, {pipeline_mode = #tpu.pipeline_mode<synchronous>, transform_indices = @transform_12, window_bounds = array<i64: 1, 8>}, {transform_indices = @transform_13, window_bounds = array<i64: 8, 8>}]} {
    %c0 = arith.constant 0 : index
    %c0_0 = arith.constant 0 : index
    %0 = vector.load %arg2[%c0, %c0_0] : memref<8x256xf32, #tpu.memory_space<vmem>>, vector<8x256xf32>
    %1 = arith.truncf %0 : vector<8x256xf32> to vector<8x256xbf16>
    %c0_1 = arith.constant 0 : index
    %c0_2 = arith.constant 0 : index
    %2 = vector.load %arg1[%c0_1, %c0_2] : memref<8x16xf32, #tpu.memory_space<vmem>>, vector<8x16xf32>
    %c0_3 = arith.constant 0 : index
    %c0_4 = arith.constant 0 : index
    %3 = vector.load %arg3[%c0_3, %c0_4] : memref<16x256xf32, #tpu.memory_space<vmem>>, vector<16x256xf32>
    %cst = arith.constant dense<0.000000e+00> : vector<8x256xf32>
    %4 = tpu.matmul %2, %3, %cst {dimension_numbers = #tpu.dot_dimension_numbers<[1], [0], [0], [1], [0, 0, 1, 1], [], []>} : vector<8x16xf32>, vector<16x256xf32>, vector<8x256xf32> -> vector<8x256xf32>
    %c0_5 = arith.constant 0 : index
    %c0_6 = arith.constant 0 : index
    %5 = vector.load %arg4[%c0_5, %c0_6] : memref<256x256xbf16, #tpu.memory_space<vmem>>, vector<256x256xbf16>
    %cst_7 = arith.constant dense<0.000000e+00> : vector<8x256xf32>
    %6 = tpu.matmul %1, %5, %cst_7 {dimension_numbers = #tpu.dot_dimension_numbers<[1], [0], [0], [1], [0, 0, 1, 1], [], []>} : vector<8x256xbf16>, vector<256x256xbf16>, vector<8x256xf32> -> vector<8x256xf32>
    %7 = arith.addf %4, %6 : vector<8x256xf32>
    %8 = arith.truncf %7 : vector<8x256xf32> to vector<8x256xbf16>
    %c0_8 = arith.constant 0 : index
    %c0_9 = arith.constant 0 : index
    %9 = vector.load %arg5[%c0_8, %c0_9] : memref<1x256xbf16, #tpu.memory_space<vmem>>, vector<1x256xbf16>
    %10 = vector.broadcast %9 : vector<1x256xbf16> to vector<8x256xbf16>
    %11 = arith.addf %8, %10 : vector<8x256xbf16>
    %cst_10 = arith.constant 0.000000e+00 : bf16
    %12 = vector.broadcast %cst_10 : bf16 to vector<8x256xbf16>
    %13 = arith.maximumf %11, %12 : vector<8x256xbf16>
    %c0_11 = arith.constant 0 : index
    %c0_12 = arith.constant 0 : index
    %14 = vector.load %arg6[%c0_11, %c0_12] : memref<256x256xbf16, #tpu.memory_space<vmem>>, vector<256x256xbf16>
    %cst_13 = arith.constant dense<0.000000e+00> : vector<8x256xf32>
    %15 = tpu.matmul %13, %14, %cst_13 {dimension_numbers = #tpu.dot_dimension_numbers<[1], [0], [0], [1], [0, 0, 1, 1], [], []>} : vector<8x256xbf16>, vector<256x256xbf16>, vector<8x256xf32> -> vector<8x256xf32>
    %16 = arith.truncf %15 : vector<8x256xf32> to vector<8x256xbf16>
    %c0_14 = arith.constant 0 : index
    %c0_15 = arith.constant 0 : index
    %17 = vector.load %arg7[%c0_14, %c0_15] : memref<1x256xbf16, #tpu.memory_space<vmem>>, vector<1x256xbf16>
    %18 = vector.broadcast %17 : vector<1x256xbf16> to vector<8x256xbf16>
    %19 = arith.addf %16, %18 : vector<8x256xbf16>
    %cst_16 = arith.constant 0.000000e+00 : bf16
    %20 = vector.broadcast %cst_16 : bf16 to vector<8x256xbf16>
    %21 = arith.maximumf %19, %20 : vector<8x256xbf16>
    %c0_17 = arith.constant 0 : index
    %c0_18 = arith.constant 0 : index
    %22 = vector.load %arg8[%c0_17, %c0_18] : memref<256x256xbf16, #tpu.memory_space<vmem>>, vector<256x256xbf16>
    %cst_19 = arith.constant dense<0.000000e+00> : vector<8x256xf32>
    %23 = tpu.matmul %21, %22, %cst_19 {dimension_numbers = #tpu.dot_dimension_numbers<[1], [0], [0], [1], [0, 0, 1, 1], [], []>} : vector<8x256xbf16>, vector<256x256xbf16>, vector<8x256xf32> -> vector<8x256xf32>
    %24 = arith.truncf %23 : vector<8x256xf32> to vector<8x256xbf16>
    %c0_20 = arith.constant 0 : index
    %c0_21 = arith.constant 0 : index
    %25 = vector.load %arg9[%c0_20, %c0_21] : memref<1x256xbf16, #tpu.memory_space<vmem>>, vector<1x256xbf16>
    %26 = vector.broadcast %25 : vector<1x256xbf16> to vector<8x256xbf16>
    %27 = arith.addf %24, %26 : vector<8x256xbf16>
    %cst_22 = arith.constant 0.000000e+00 : bf16
    %28 = vector.broadcast %cst_22 : bf16 to vector<8x256xbf16>
    %29 = arith.maximumf %27, %28 : vector<8x256xbf16>
    %c0_23 = arith.constant 0 : index
    %c0_24 = arith.constant 0 : index
    %30 = vector.load %arg10[%c0_23, %c0_24] : memref<256x256xbf16, #tpu.memory_space<vmem>>, vector<256x256xbf16>
    %cst_25 = arith.constant dense<0.000000e+00> : vector<8x256xf32>
    %31 = tpu.matmul %29, %30, %cst_25 {dimension_numbers = #tpu.dot_dimension_numbers<[1], [0], [0], [1], [0, 0, 1, 1], [], []>} : vector<8x256xbf16>, vector<256x256xbf16>, vector<8x256xf32> -> vector<8x256xf32>
    %32 = arith.truncf %31 : vector<8x256xf32> to vector<8x256xbf16>
    %c0_26 = arith.constant 0 : index
    %c0_27 = arith.constant 0 : index
    %33 = vector.load %arg11[%c0_26, %c0_27] : memref<1x256xbf16, #tpu.memory_space<vmem>>, vector<1x256xbf16>
    %34 = vector.broadcast %33 : vector<1x256xbf16> to vector<8x256xbf16>
    %35 = arith.addf %32, %34 : vector<8x256xbf16>
    %cst_28 = arith.constant 0.000000e+00 : bf16
    %36 = vector.broadcast %cst_28 : bf16 to vector<8x256xbf16>
    %37 = arith.maximumf %35, %36 : vector<8x256xbf16>
    %c0_29 = arith.constant 0 : index
    %c0_30 = arith.constant 0 : index
    %38 = vector.load %arg12[%c0_29, %c0_30] : memref<256x8xbf16, #tpu.memory_space<vmem>>, vector<256x8xbf16>
    %cst_31 = arith.constant dense<0.000000e+00> : vector<8x8xf32>
    %39 = tpu.matmul %37, %38, %cst_31 {dimension_numbers = #tpu.dot_dimension_numbers<[1], [0], [0], [1], [0, 0, 1, 1], [], []>} : vector<8x256xbf16>, vector<256x8xbf16>, vector<8x8xf32> -> vector<8x8xf32>
    %c0_32 = arith.constant 0 : index
    %c0_33 = arith.constant 0 : index
    %40 = vector.load %arg13[%c0_32, %c0_33] : memref<1x8xf32, #tpu.memory_space<vmem>>, vector<1x8xf32>
    %41 = vector.broadcast %40 : vector<1x8xf32> to vector<8x8xf32>
    %42 = arith.addf %39, %41 : vector<8x8xf32>
    %cst_34 = arith.constant 0.000000e+00 : f32
    %43 = vector.broadcast %cst_34 : f32 to vector<8x8xf32>
    %44 = arith.subf %43, %42 : vector<8x8xf32>
    %45 = math.exp %44 : vector<8x8xf32>
    %cst_35 = arith.constant 1.000000e+00 : f32
    %46 = vector.broadcast %cst_35 : f32 to vector<8x8xf32>
    %47 = arith.addf %46, %45 : vector<8x8xf32>
    %48 = tpu.reciprocal %47 {approx = true} : vector<8x8xf32> -> vector<8x8xf32>
    %c0_36 = arith.constant 0 : index
    %c0_37 = arith.constant 0 : index
    %49 = vector.load %arg14[%c0_36, %c0_37] : memref<8x8xf32, #tpu.memory_space<vmem>>, vector<8x8xf32>
    tpu.vector_store %arg14[%c0_36, %c0_37], %48 {strides = array<i32>} : memref<8x8xf32, #tpu.memory_space<vmem>>, vector<8x8xf32>,
    return
  }
  func.func @transform_0(%arg0: i32) -> (i32, i32) {
    %c0_i32 = arith.constant 0 : i32
    %c0_i32_0 = arith.constant 0 : i32
    return %arg0, %c0_i32 : i32, i32
  }
  func.func @transform_1(%arg0: i32) -> (i32, i32) {
    %c0_i32 = arith.constant 0 : i32
    %c0_i32_0 = arith.constant 0 : i32
    return %arg0, %c0_i32 : i32, i32
  }
  func.func @transform_2(%arg0: i32) -> (i32, i32) {
    %c0_i32 = arith.constant 0 : i32
    %c0_i32_0 = arith.constant 0 : i32
    %c0_i32_1 = arith.constant 0 : i32
    return %c0_i32, %c0_i32_0 : i32, i32
  }
  func.func @transform_3(%arg0: i32) -> (i32, i32) {
    %c0_i32 = arith.constant 0 : i32
    %c0_i32_0 = arith.constant 0 : i32
    %c0_i32_1 = arith.constant 0 : i32
    return %c0_i32, %c0_i32_0 : i32, i32
  }
  func.func @transform_4(%arg0: i32) -> (i32, i32) {
    %c0_i32 = arith.constant 0 : i32
    %c0_i32_0 = arith.constant 0 : i32
    %c0_i32_1 = arith.constant 0 : i32
    return %c0_i32, %c0_i32_0 : i32, i32
  }
  func.func @transform_5(%arg0: i32) -> (i32, i32) {
    %c0_i32 = arith.constant 0 : i32
    %c0_i32_0 = arith.constant 0 : i32
    %c0_i32_1 = arith.constant 0 : i32
    return %c0_i32, %c0_i32_0 : i32, i32
  }
  func.func @transform_6(%arg0: i32) -> (i32, i32) {
    %c0_i32 = arith.constant 0 : i32
    %c0_i32_0 = arith.constant 0 : i32
    %c0_i32_1 = arith.constant 0 : i32
    return %c0_i32, %c0_i32_0 : i32, i32
  }
  func.func @transform_7(%arg0: i32) -> (i32, i32) {
    %c0_i32 = arith.constant 0 : i32
    %c0_i32_0 = arith.constant 0 : i32
    %c0_i32_1 = arith.constant 0 : i32
    return %c0_i32, %c0_i32_0 : i32, i32
  }
  func.func @transform_8(%arg0: i32) -> (i32, i32) {
    %c0_i32 = arith.constant 0 : i32
    %c0_i32_0 = arith.constant 0 : i32
    %c0_i32_1 = arith.constant 0 : i32
    return %c0_i32, %c0_i32_0 : i32, i32
  }
  func.func @transform_9(%arg0: i32) -> (i32, i32) {
    %c0_i32 = arith.constant 0 : i32
    %c0_i32_0 = arith.constant 0 : i32
    %c0_i32_1 = arith.constant 0 : i32
    return %c0_i32, %c0_i32_0 : i32, i32
  }
  func.func @transform_10(%arg0: i32) -> (i32, i32) {
    %c0_i32 = arith.constant 0 : i32
    %c0_i32_0 = arith.constant 0 : i32
    %c0_i32_1 = arith.constant 0 : i32
    return %c0_i32, %c0_i32_0 : i32, i32
  }
  func.func @transform_11(%arg0: i32) -> (i32, i32) {
    %c0_i32 = arith.constant 0 : i32
    %c0_i32_0 = arith.constant 0 : i32
    %c0_i32_1 = arith.constant 0 : i32
    return %c0_i32, %c0_i32_0 : i32, i32
  }
  func.func @transform_12(%arg0: i32) -> (i32, i32) {
    %c0_i32 = arith.constant 0 : i32
    %c0_i32_0 = arith.constant 0 : i32
    %c0_i32_1 = arith.constant 0 : i32
    return %c0_i32, %c0_i32_0 : i32, i32
  }
  func.func @transform_13(%arg0: i32) -> (i32, i32) {
    %c0_i32 = arith.constant 0 : i32
    %c0_i32_0 = arith.constant 0 : i32
    return %arg0, %c0_i32 : i32, i32
  }
}

</mosaic_0001>

<llo_original>
// kernel: color_network_forward.1
$region0: #{color_network_forward.1}
  #allocation0 [shape = 'u32[]', space=smem, size = 0x4, offset = 0x4, fixed_abs, tag = 'smem constant byte address 0x4 - core index']
  #allocation1 [shape = 'u32[144,128]{1,0:T(1,128)}', space=vmem, size = 0x12000, scoped, tag = 'internal scratch']
  %s0 = inlined_call_operand.vmem [shape: f32[16,16], index: 0, kind: input, shape index: {}]
  %s1 = inlined_call_operand.vmem [shape: f32[16,256], index: 1, kind: input, shape index: {}]
  %s2 = inlined_call_operand.vmem [shape: f32[16,256], index: 2, kind: input, shape index: {}]
  %s3 = inlined_call_operand.vmem [shape: bf16[256,256], index: 3, kind: input, shape index: {}]
  %s4 = inlined_call_operand.vmem [shape: bf16[1,256], index: 4, kind: input, shape index: {}]
  %s5 = inlined_call_operand.vmem [shape: bf16[256,256], index: 5, kind: input, shape index: {}]
  %s6 = inlined_call_operand.vmem [shape: bf16[1,256], index: 6, kind: input, shape index: {}]
  %s7 = inlined_call_operand.hbm [shape: bf16[256,256], index: 7, kind: input, shape index: {}]
  %s8 = inlined_call_operand.vmem [shape: bf16[1,256], index: 8, kind: input, shape index: {}]
  %s9 = inlined_call_operand.hbm [shape: bf16[256,256], index: 9, kind: input, shape index: {}]
  %s10 = inlined_call_operand.vmem [shape: bf16[1,256], index: 10, kind: input, shape index: {}]
  %s11 = inlined_call_operand.vmem [shape: bf16[256,8], index: 11, kind: input, shape index: {}]
  %s12 = inlined_call_operand.vmem [shape: f32[1,8], index: 12, kind: input, shape index: {}]
  %s13 = inlined_call_operand.vmem [shape: f32[16,8], index: 13, kind: output, shape index: {}]
  %s14 = sld [smem:[#allocation0]]
  $region93: #{color_network_forward.1} parent=0
    _
  %s16 = ssub.s32 1, %s14
  %s17 = scalar_select 0, %s16, %s14
  $region1: #{color_network_forward.1} parent=0
    #allocation2 [shape = 'u8[131072]{0}', space=vmem, size = 0x20000, scoped, tag = 'input window, operand 7, single buffered']
    #allocation3 [shape = 's32[2]{0}', space=sflag, size = 0x8, scoped, tag = 'scoped memory for color_network_forward.1']
    #allocation4 [shape = 'u8[131072]{0}', space=vmem, size = 0x20000, scoped, tag = 'input window, operand 9, single buffered']
    #allocation5 [shape = 's32[1]{0}', space=sflag, size = 0x4, scoped, tag = 'scoped memory for color_network_forward.1']
    %18 = vsyncpa [#allocation3], 0
    %19 = vsyncpa [#allocation5], 0
    loop: start=0, step=1, limit=4
    $region2: #{color_network_forward.1} parent=1 // loop_pre_header
      _
    $region3: #{color_network_forward.1} parent=1 // loop_header
      %s21 = sphi 0, %s25
      %p22 = scmp.ge.s32.totalorder %s21, 4
      %s31 = sphi 0, %s33
      %s34 = sphi 0, %s31
      %s35 = sphi 0, %s34
      %s51 = sphi 0, %s35
      %s57 = sphi 0, %s59
      %s60 = sphi 0, %s57
      %s61 = sphi 0, %s60
      %s77 = sphi 0, %s61
      %s81 = sphi 0, %s81
      %s83 = sphi 0, %s81
      %s84 = sphi 0, %s83
      %s98 = sphi 0, %s84
      %s102 = sphi 0, %s102
      %s104 = sphi 0, %s102
      %s105 = sphi 0, %s104
      %s119 = sphi 0, %s105
      %s123 = sphi 0, %s123
      %s125 = sphi 0, %s123
      %s126 = sphi 0, %s125
      %s140 = sphi 0, %s126
      %s144 = sphi 0, %s144
      %s146 = sphi 0, %s144
      %s147 = sphi 0, %s146
      %s161 = sphi 0, %s147
      %s165 = sphi 0, %s165
      %s167 = sphi 0, %s165
      %s168 = sphi 0, %s167
      %s182 = sphi 0, %s168
      %s186 = sphi 0, %s186
      %s188 = sphi 0, %s186
      %s189 = sphi 0, %s188
      %s203 = sphi 0, %s189
      %s207 = sphi 0, %s207
      %s209 = sphi 0, %s207
      %s210 = sphi 0, %s209
      %s224 = sphi 0, %s210
      %s228 = sphi 0, %s228
      %s230 = sphi 0, %s228
      %s231 = sphi 0, %s230
      %s245 = sphi 0, %s231
      %s249 = sphi 0, %s249
      %s251 = sphi 0, %s249
      %s252 = sphi 0, %s251
      %s266 = sphi 0, %s252
      %s270 = sphi 0, %s270
      %s272 = sphi 0, %s270
      %s273 = sphi 0, %s272
      %s287 = sphi 0, %s273
      %s291 = sphi 0, %s291
      %s293 = sphi 0, %s291
      %s294 = sphi 0, %s293
      %s308 = sphi 0, %s294
      %s314 = sphi 0, %s316
      %s317 = sphi 0, %s314
      %s318 = sphi 0, %s317
      %s334 = sphi 0, %s318
    $region4: #{color_network_forward.1} parent=1 // loop_header_branch
      %24 = sbr.rel (%p22) target = $region8
    $region5: #{color_network_forward.1} parent=1 // loop_body
      %s26 = ssub.s32 %s21, 1
      %s27 = ssub.s32 %s21, 2
      %s28 = sadd.s32 %s21, 1
      %s29 = ssub.s32 %s21, %s28
      %p30 = scmp.eq.s32.totalorder %s29, 0
      %s32 = sadd.s32 %s31, 1
      %s33 = scalar_select %p30, %s31, %s32
      %p36 = pneg %p30
      %p37 = scmp.eq.s32.totalorder %s21, 1
      %p38 = por %p36, %p37
      %p39 = scmp.ne.s32.totalorder %s31, %s34
      %p40 = scmp.eq.s32.totalorder %s21, 0
      %p41 = por %p39, %p40
      %p42 = scmp.ne.s32.totalorder %s31, %s34
      %p43 = scmp.eq.s32.totalorder %s26, 1
      %p44 = por %p42, %p43
      %p45 = scmp.ne.s32.totalorder %s34, %s35
      %p46 = scmp.eq.s32.totalorder %s26, 0
      %p47 = por %p45, %p46
      %p48 = scmp.ne.s32.totalorder %s34, %s35
      %p49 = scmp.eq.s32.totalorder %s27, 1
      %p50 = por %p48, %p49
      %p52 = scmp.ne.s32.totalorder %s35, %s51
      %p53 = scmp.eq.s32.totalorder %s27, 0
      %p54 = por %p52, %p53
      %s55 = ssub.s32 %s21, %s28
      %p56 = scmp.eq.s32.totalorder %s55, 0
      %s58 = sadd.s32 %s57, 1
      %s59 = scalar_select %p56, %s57, %s58
      %p62 = pneg %p56
      %p63 = scmp.eq.s32.totalorder %s21, 1
      %p64 = por %p62, %p63
      %p65 = scmp.ne.s32.totalorder %s57, %s60
      %p66 = scmp.eq.s32.totalorder %s21, 0
      %p67 = por %p65, %p66
      %p68 = scmp.ne.s32.totalorder %s57, %s60
      %p69 = scmp.eq.s32.totalorder %s26, 1
      %p70 = por %p68, %p69
      %p71 = scmp.ne.s32.totalorder %s60, %s61
      %p72 = scmp.eq.s32.totalorder %s26, 0
      %p73 = por %p71, %p72
      %p74 = scmp.ne.s32.totalorder %s60, %s61
      %p75 = scmp.eq.s32.totalorder %s27, 1
      %p76 = por %p74, %p75
      %p78 = scmp.ne.s32.totalorder %s61, %s77
      %p79 = scmp.eq.s32.totalorder %s27, 0
      %p80 = por %p78, %p79
      %s82 = sadd.s32 %s81, 1
      %p85 = scmp.eq.s32.totalorder %s21, 1
      %p86 = scmp.ne.s32.totalorder %s81, %s83
      %p87 = scmp.eq.s32.totalorder %s21, 0
      %p88 = por %p86, %p87
      %p89 = scmp.ne.s32.totalorder %s81, %s83
      %p90 = scmp.eq.s32.totalorder %s26, 1
      %p91 = por %p89, %p90
      %p92 = scmp.ne.s32.totalorder %s83, %s84
      %p93 = scmp.eq.s32.totalorder %s26, 0
      %p94 = por %p92, %p93
      %p95 = scmp.ne.s32.totalorder %s83, %s84
      %p96 = scmp.eq.s32.totalorder %s27, 1
      %p97 = por %p95, %p96
      %p99 = scmp.ne.s32.totalorder %s84, %s98
      %p100 = scmp.eq.s32.totalorder %s27, 0
      %p101 = por %p99, %p100
      %s103 = sadd.s32 %s102, 1
      %p106 = scmp.eq.s32.totalorder %s21, 1
      %p107 = scmp.ne.s32.totalorder %s102, %s104
      %p108 = scmp.eq.s32.totalorder %s21, 0
      %p109 = por %p107, %p108
      %p110 = scmp.ne.s32.totalorder %s102, %s104
      %p111 = scmp.eq.s32.totalorder %s26, 1
      %p112 = por %p110, %p111
      %p113 = scmp.ne.s32.totalorder %s104, %s105
      %p114 = scmp.eq.s32.totalorder %s26, 0
      %p115 = por %p113, %p114
      %p116 = scmp.ne.s32.totalorder %s104, %s105
      %p117 = scmp.eq.s32.totalorder %s27, 1
      %p118 = por %p116, %p117
      %p120 = scmp.ne.s32.totalorder %s105, %s119
      %p121 = scmp.eq.s32.totalorder %s27, 0
      %p122 = por %p120, %p121
      %s124 = sadd.s32 %s123, 1
      %p127 = scmp.eq.s32.totalorder %s21, 1
      %p128 = scmp.ne.s32.totalorder %s123, %s125
      %p129 = scmp.eq.s32.totalorder %s21, 0
      %p130 = por %p128, %p129
      %p131 = scmp.ne.s32.totalorder %s123, %s125
      %p132 = scmp.eq.s32.totalorder %s26, 1
      %p133 = por %p131, %p132
      %p134 = scmp.ne.s32.totalorder %s125, %s126
      %p135 = scmp.eq.s32.totalorder %s26, 0
      %p136 = por %p134, %p135
      %p137 = scmp.ne.s32.totalorder %s125, %s126
      %p138 = scmp.eq.s32.totalorder %s27, 1
      %p139 = por %p137, %p138
      %p141 = scmp.ne.s32.totalorder %s126, %s140
      %p142 = scmp.eq.s32.totalorder %s27, 0
      %p143 = por %p141, %p142
      %s145 = sadd.s32 %s144, 1
      %p148 = scmp.eq.s32.totalorder %s21, 1
      %p149 = scmp.ne.s32.totalorder %s144, %s146
      %p150 = scmp.eq.s32.totalorder %s21, 0
      %p151 = por %p149, %p150
      %p152 = scmp.ne.s32.totalorder %s144, %s146
      %p153 = scmp.eq.s32.totalorder %s26, 1
      %p154 = por %p152, %p153
      %p155 = scmp.ne.s32.totalorder %s146, %s147
      %p156 = scmp.eq.s32.totalorder %s26, 0
      %p157 = por %p155, %p156
      %p158 = scmp.ne.s32.totalorder %s146, %s147
      %p159 = scmp.eq.s32.totalorder %s27, 1
      %p160 = por %p158, %p159
      %p162 = scmp.ne.s32.totalorder %s147, %s161
      %p163 = scmp.eq.s32.totalorder %s27, 0
      %p164 = por %p162, %p163
      %s166 = sadd.s32 %s165, 1
      %p169 = scmp.eq.s32.totalorder %s21, 1
      %p170 = scmp.ne.s32.totalorder %s165, %s167
      %p171 = scmp.eq.s32.totalorder %s21, 0
      %p172 = por %p170, %p171
      %p173 = scmp.ne.s32.totalorder %s165, %s167
      %p174 = scmp.eq.s32.totalorder %s26, 1
      %p175 = por %p173, %p174
      %p176 = scmp.ne.s32.totalorder %s167, %s168
      %p177 = scmp.eq.s32.totalorder %s26, 0
      %p178 = por %p176, %p177
      %p179 = scmp.ne.s32.totalorder %s167, %s168
      %p180 = scmp.eq.s32.totalorder %s27, 1
      %p181 = por %p179, %p180
      %p183 = scmp.ne.s32.totalorder %s168, %s182
      %p184 = scmp.eq.s32.totalorder %s27, 0
      %p185 = por %p183, %p184
      %s187 = sadd.s32 %s186, 1
      %p190 = scmp.eq.s32.totalorder %s21, 1
      %p191 = scmp.ne.s32.totalorder %s186, %s188
      %p192 = scmp.eq.s32.totalorder %s21, 0
      %p193 = por %p191, %p192
      %p194 = scmp.ne.s32.totalorder %s186, %s188
      %p195 = scmp.eq.s32.totalorder %s26, 1
      %p196 = por %p194, %p195
      %p197 = scmp.ne.s32.totalorder %s188, %s189
      %p198 = scmp.eq.s32.totalorder %s26, 0
      %p199 = por %p197, %p198
      %p200 = scmp.ne.s32.totalorder %s188, %s189
      %p201 = scmp.eq.s32.totalorder %s27, 1
      %p202 = por %p200, %p201
      %p204 = scmp.ne.s32.totalorder %s189, %s203
      %p205 = scmp.eq.s32.totalorder %s27, 0
      %p206 = por %p204, %p205
      %s208 = sadd.s32 %s207, 1
      %p211 = scmp.eq.s32.totalorder %s21, 1
      %p212 = scmp.ne.s32.totalorder %s207, %s209
      %p213 = scmp.eq.s32.totalorder %s21, 0
      %p214 = por %p212, %p213
      %p215 = scmp.ne.s32.totalorder %s207, %s209
      %p216 = scmp.eq.s32.totalorder %s26, 1
      %p217 = por %p215, %p216
      %p218 = scmp.ne.s32.totalorder %s209, %s210
      %p219 = scmp.eq.s32.totalorder %s26, 0
      %p220 = por %p218, %p219
      %p221 = scmp.ne.s32.totalorder %s209, %s210
      %p222 = scmp.eq.s32.totalorder %s27, 1
      %p223 = por %p221, %p222
      %p225 = scmp.ne.s32.totalorder %s210, %s224
      %p226 = scmp.eq.s32.totalorder %s27, 0
      %p227 = por %p225, %p226
      %s229 = sadd.s32 %s228, 1
      %p232 = scmp.eq.s32.totalorder %s21, 1
      %p233 = scmp.ne.s32.totalorder %s228, %s230
      %p234 = scmp.eq.s32.totalorder %s21, 0
      %p235 = por %p233, %p234
      %p236 = scmp.ne.s32.totalorder %s228, %s230
      %p237 = scmp.eq.s32.totalorder %s26, 1
      %p238 = por %p236, %p237
      %p239 = scmp.ne.s32.totalorder %s230, %s231
      %p240 = scmp.eq.s32.totalorder %s26, 0
      %p241 = por %p239, %p240
      %p242 = scmp.ne.s32.totalorder %s230, %s231
      %p243 = scmp.eq.s32.totalorder %s27, 1
      %p244 = por %p242, %p243
      %p246 = scmp.ne.s32.totalorder %s231, %s245
      %p247 = scmp.eq.s32.totalorder %s27, 0
      %p248 = por %p246, %p247
      %s250 = sadd.s32 %s249, 1
      %p253 = scmp.eq.s32.totalorder %s21, 1
      %p254 = scmp.ne.s32.totalorder %s249, %s251
      %p255 = scmp.eq.s32.totalorder %s21, 0
      %p256 = por %p254, %p255
      %p257 = scmp.ne.s32.totalorder %s249, %s251
      %p258 = scmp.eq.s32.totalorder %s26, 1
      %p259 = por %p257, %p258
      %p260 = scmp.ne.s32.totalorder %s251, %s252
      %p261 = scmp.eq.s32.totalorder %s26, 0
      %p262 = por %p260, %p261
      %p263 = scmp.ne.s32.totalorder %s251, %s252
      %p264 = scmp.eq.s32.totalorder %s27, 1
      %p265 = por %p263, %p264
      %p267 = scmp.ne.s32.totalorder %s252, %s266
      %p268 = scmp.eq.s32.totalorder %s27, 0
      %p269 = por %p267, %p268
      %s271 = sadd.s32 %s270, 1
      %p274 = scmp.eq.s32.totalorder %s21, 1
      %p275 = scmp.ne.s32.totalorder %s270, %s272
      %p276 = scmp.eq.s32.totalorder %s21, 0
      %p277 = por %p275, %p276
      %p278 = scmp.ne.s32.totalorder %s270, %s272
      %p279 = scmp.eq.s32.totalorder %s26, 1
      %p280 = por %p278, %p279
      %p281 = scmp.ne.s32.totalorder %s272, %s273
      %p282 = scmp.eq.s32.totalorder %s26, 0
      %p283 = por %p281, %p282
      %p284 = scmp.ne.s32.totalorder %s272, %s273
      %p285 = scmp.eq.s32.totalorder %s27, 1
      %p286 = por %p284, %p285
      %p288 = scmp.ne.s32.totalorder %s273, %s287
      %p289 = scmp.eq.s32.totalorder %s27, 0
      %p290 = por %p288, %p289
      %s292 = sadd.s32 %s291, 1
      %p295 = scmp.eq.s32.totalorder %s21, 1
      %p296 = scmp.ne.s32.totalorder %s291, %s293
      %p297 = scmp.eq.s32.totalorder %s21, 0
      %p298 = por %p296, %p297
      %p299 = scmp.ne.s32.totalorder %s291, %s293
      %p300 = scmp.eq.s32.totalorder %s26, 1
      %p301 = por %p299, %p300
      %p302 = scmp.ne.s32.totalorder %s293, %s294
      %p303 = scmp.eq.s32.totalorder %s26, 0
      %p304 = por %p302, %p303
      %p305 = scmp.ne.s32.totalorder %s293, %s294
      %p306 = scmp.eq.s32.totalorder %s27, 1
      %p307 = por %p305, %p306
      %p309 = scmp.ne.s32.totalorder %s294, %s308
      %p310 = scmp.eq.s32.totalorder %s27, 0
      %p311 = por %p309, %p310
      %s312 = ssub.s32 %s21, %s28
      %p313 = scmp.eq.s32.totalorder %s312, 0
      %s315 = sadd.s32 %s314, 1
      %s316 = scalar_select %p313, %s314, %s315
      %p319 = pneg %p313
      %p320 = scmp.eq.s32.totalorder %s21, 1
      %p321 = por %p319, %p320
      %p322 = scmp.ne.s32.totalorder %s314, %s317
      %p323 = scmp.eq.s32.totalorder %s21, 0
      %p324 = por %p322, %p323
      %p325 = scmp.ne.s32.totalorder %s314, %s317
      %p326 = scmp.eq.s32.totalorder %s26, 1
      %p327 = por %p325, %p326
      %p328 = scmp.ne.s32.totalorder %s317, %s318
      %p329 = scmp.eq.s32.totalorder %s26, 0
      %p330 = por %p328, %p329
      %p331 = scmp.ne.s32.totalorder %s317, %s318
      %p332 = scmp.eq.s32.totalorder %s27, 1
      %p333 = por %p331, %p332
      %p335 = scmp.ne.s32.totalorder %s318, %s334
      %p336 = scmp.eq.s32.totalorder %s27, 0
      %p337 = por %p335, %p336
      %p338 = scmp.le.s32.totalorder 1, %s21
      %p339 = scmp.lt.s32.totalorder %s21, 3
      %p340 = pnand %p338, %p339
      %p341 = pneg %p340
      // Predicated region
      $region9: #{color_network_forward.1} parent=5 // pred_check
        _
      $region10: #{color_network_forward.1} parent=5 // pred_check_branch
        %343 = sbr.rel (%p340) target = $region12
      $region11: #{color_network_forward.1} parent=5 // pred_region
        %s344 = ssub.s32 %s21, 1
        // Predicated region
        $region13: #{color_network_forward.1} parent=11 // pred_check
          %p345 = pneg %p94
        $region14: #{color_network_forward.1} parent=11 // pred_check_branch
          %347 = sbr.rel (%p345) target = $region16
        $region15: #{color_network_forward.1} parent=11 // pred_region
          _
        $region16: #{color_network_forward.1} parent=11 // pred_fallthru
          _
        // Predicated region
        $region17: #{color_network_forward.1} parent=11 // pred_check
          %p348 = pneg %p115
        $region18: #{color_network_forward.1} parent=11 // pred_check_branch
          %350 = sbr.rel (%p348) target = $region20
        $region19: #{color_network_forward.1} parent=11 // pred_region
          _
        $region20: #{color_network_forward.1} parent=11 // pred_fallthru
          _
        // Predicated region
        $region21: #{color_network_forward.1} parent=11 // pred_check
          %p351 = pneg %p136
        $region22: #{color_network_forward.1} parent=11 // pred_check_branch
          %353 = sbr.rel (%p351) target = $region24
        $region23: #{color_network_forward.1} parent=11 // pred_region
          _
        $region24: #{color_network_forward.1} parent=11 // pred_fallthru
          _
        // Predicated region
        $region25: #{color_network_forward.1} parent=11 // pred_check
          %p354 = pneg %p157
        $region26: #{color_network_forward.1} parent=11 // pred_check_branch
          %356 = sbr.rel (%p354) target = $region28
        $region27: #{color_network_forward.1} parent=11 // pred_region
          _
        $region28: #{color_network_forward.1} parent=11 // pred_fallthru
          _
        // Predicated region
        $region29: #{color_network_forward.1} parent=11 // pred_check
          %p357 = pneg %p178
        $region30: #{color_network_forward.1} parent=11 // pred_check_branch
          %359 = sbr.rel (%p357) target = $region32
        $region31: #{color_network_forward.1} parent=11 // pred_region
          _
        $region32: #{color_network_forward.1} parent=11 // pred_fallthru
          _
        // Predicated region
        $region33: #{color_network_forward.1} parent=11 // pred_check
          %p360 = pneg %p199
        $region34: #{color_network_forward.1} parent=11 // pred_check_branch
          %362 = sbr.rel (%p360) target = $region36
        $region35: #{color_network_forward.1} parent=11 // pred_region
          %s364 = ssub.s32 4096, 4096
          %365 = vsyncadd [#allocation3], %s364
          %s366 = sshll.u32 [#allocation2], 4
          %s367 = int_to_ptr.vmem [resolvable:$true] %s366
          %372 = dma.hbm_to_vmem [thread:$0]  %s7, 4096, %s367, [#allocation3], 128, 128, 8
        $region36: #{color_network_forward.1} parent=11 // pred_fallthru
          _
        // Predicated region
        $region37: #{color_network_forward.1} parent=11 // pred_check
          %p373 = pneg %p220
        $region38: #{color_network_forward.1} parent=11 // pred_check_branch
          %375 = sbr.rel (%p373) target = $region40
        $region39: #{color_network_forward.1} parent=11 // pred_region
          _
        $region40: #{color_network_forward.1} parent=11 // pred_fallthru
          _
        // Predicated region
        $region41: #{color_network_forward.1} parent=11 // pred_check
          %p376 = pneg %p241
        $region42: #{color_network_forward.1} parent=11 // pred_check_branch
          %378 = sbr.rel (%p376) target = $region44
        $region43: #{color_network_forward.1} parent=11 // pred_region
          %s380 = ssub.s32 4096, 4096
          %381 = vsyncadd [#allocation5], %s380
          %s382 = sshll.u32 [#allocation4], 4
          %s383 = int_to_ptr.vmem [resolvable:$true] %s382
          %388 = dma.hbm_to_vmem [thread:$0]  %s9, 4096, %s383, [#allocation5], 128, 128, 8
        $region44: #{color_network_forward.1} parent=11 // pred_fallthru
          _
        // Predicated region
        $region45: #{color_network_forward.1} parent=11 // pred_check
          %p389 = pneg %p262
        $region46: #{color_network_forward.1} parent=11 // pred_check_branch
          %391 = sbr.rel (%p389) target = $region48
        $region47: #{color_network_forward.1} parent=11 // pred_region
          _
        $region48: #{color_network_forward.1} parent=11 // pred_fallthru
          _
        // Predicated region
        $region49: #{color_network_forward.1} parent=11 // pred_check
          %p392 = pneg %p283
        $region50: #{color_network_forward.1} parent=11 // pred_check_branch
          %394 = sbr.rel (%p392) target = $region52
        $region51: #{color_network_forward.1} parent=11 // pred_region
          _
        $region52: #{color_network_forward.1} parent=11 // pred_fallthru
          _
        // Predicated region
        $region53: #{color_network_forward.1} parent=11 // pred_check
          %p395 = pneg %p304
        $region54: #{color_network_forward.1} parent=11 // pred_check_branch
          %397 = sbr.rel (%p395) target = $region56
        $region55: #{color_network_forward.1} parent=11 // pred_region
          _
        $region56: #{color_network_forward.1} parent=11 // pred_fallthru
          _
      $region12: #{color_network_forward.1} parent=5 // pred_fallthru
        _
      %p398 = scmp.lt.s32.totalorder %s21, 2
      // Predicated region
      $region57: #{color_network_forward.1} parent=5 // pred_check
        %p399 = pneg %p398
      $region58: #{color_network_forward.1} parent=5 // pred_check_branch
        %401 = sbr.rel (%p399) target = $region60
      $region59: #{color_network_forward.1} parent=5 // pred_region
        // Predicated region
        $region61: #{color_network_forward.1} parent=59 // pred_check
          %p402 = pneg %p41
        $region62: #{color_network_forward.1} parent=59 // pred_check_branch
          %404 = sbr.rel (%p402) target = $region64
        $region63: #{color_network_forward.1} parent=59 // pred_region
          %p405 = scmp.lt.s32.totalorder %s21, 1
          %s406 = scalar_select %p405, %s21, 1
          %s407 = smul.addr %s406, 8
          %s408 = scalar_lea.vmem %s0, %s407
        $region64: #{color_network_forward.1} parent=59 // pred_fallthru
          _
        // Predicated region
        $region65: #{color_network_forward.1} parent=59 // pred_check
          %p409 = pneg %p67
        $region66: #{color_network_forward.1} parent=59 // pred_check_branch
          %411 = sbr.rel (%p409) target = $region68
        $region67: #{color_network_forward.1} parent=59 // pred_region
          %p412 = scmp.lt.s32.totalorder %s21, 1
          %s413 = scalar_select %p412, %s21, 1
          %s414 = smul.addr %s413, 2
          %s415 = smul.addr %s414, 8
          %s416 = scalar_lea.vmem %s1, %s415
        $region68: #{color_network_forward.1} parent=59 // pred_fallthru
          _
      $region60: #{color_network_forward.1} parent=5 // pred_fallthru
        _
      %p417 = scmp.le.s32.totalorder 1, %s21
      %p418 = scmp.lt.s32.totalorder %s21, 3
      %p419 = pnand %p417, %p418
      %p420 = pneg %p419
      // Predicated region
      $region69: #{color_network_forward.1} parent=5 // pred_check
        _
      $region70: #{color_network_forward.1} parent=5 // pred_check_branch
        %422 = sbr.rel (%p419) target = $region72
      $region71: #{color_network_forward.1} parent=5 // pred_region
        %s423 = ssub.s32 %s21, 1
        // Predicated region
        $region73: #{color_network_forward.1} parent=71 // pred_check
          %p424 = pneg %p199
        $region74: #{color_network_forward.1} parent=71 // pred_check_branch
          %426 = sbr.rel (%p424) target = $region76
        $region75: #{color_network_forward.1} parent=71 // pred_region
          %427 = dma.done [#allocation3], 4096
        $region76: #{color_network_forward.1} parent=71 // pred_fallthru
          _
        // Predicated region
        $region77: #{color_network_forward.1} parent=71 // pred_check
          %p428 = pneg %p241
        $region78: #{color_network_forward.1} parent=71 // pred_check_branch
          %430 = sbr.rel (%p428) target = $region80
        $region79: #{color_network_forward.1} parent=71 // pred_region
          %431 = dma.done [#allocation5], 4096
        $region80: #{color_network_forward.1} parent=71 // pred_fallthru
          _
        %p432 = scmp.lt.s32.totalorder %s26, 1
        %s433 = scalar_select %p432, %s26, 1
        %s434 = smul.addr %s433, 8
        %s435 = scalar_lea.vmem %s0, %s434
        %p436 = pneg %p47
        %p437 = pneg %p44
        %p438 = scmp.lt.s32.totalorder %s26, 1
        %s439 = scalar_select %p438, %s26, 1
        %s440 = smul.addr %s439, 2
        %s441 = smul.addr %s440, 8
        %s442 = scalar_lea.vmem %s1, %s441
        %p443 = pneg %p73
        %p444 = pneg %p70
        %p445 = pneg %p94
        %p446 = pneg %p91
        %p447 = pneg %p115
        %p448 = pneg %p112
        %p449 = pneg %p136
        %p450 = pneg %p133
        %p451 = pneg %p157
        %p452 = pneg %p154
        %p453 = pneg %p178
        %p454 = pneg %p175
        %p455 = pneg %p199
        %p456 = pneg %p196
        %p457 = pneg %p220
        %p458 = pneg %p217
        %p459 = pneg %p241
        %p460 = pneg %p238
        %p461 = pneg %p262
        %p462 = pneg %p259
        %p463 = pneg %p283
        %p464 = pneg %p280
        %p465 = pneg %p304
        %p466 = pneg %p301
        %p467 = pneg %p330
        %p468 = pneg %p327
        %p469 = scmp.lt.s32.totalorder %s26, 1
        %s470 = scalar_select %p469, %s26, 1
        %s471 = smul.addr %s470, 8
        %s472 = scalar_lea.vmem %s13, %s471
        %p473 = scmp.lt.s32.totalorder %s26, 1
        %s474 = scalar_select %p473, %s26, 1
        %s475 = smul.addr %s474, 8
        %s476 = scalar_lea.vmem %s0, %s475
        %p477 = scmp.lt.s32.totalorder %s26, 1
        %s478 = scalar_select %p477, %s26, 1
        %s479 = smul.addr %s478, 2
        %s480 = smul.addr %s479, 8
        %s481 = scalar_lea.vmem %s1, %s480
        %p482 = scmp.lt.s32.totalorder %s26, 1
        %s483 = scalar_select %p482, %s26, 1
        %s484 = smul.addr %s483, 8
        %s485 = scalar_lea.vmem %s13, %s484
        %v487 = vld [vmem:[%s481] sm:$0xff]
        %v488 = vld [vmem:[%s481 + $0x8] sm:$0xff]
        %v489 = vpack.c.bf16 %v487, %v487
        %v490 = vpack.c.bf16 %v488, %v488
        %v491 = vld [vmem:[%s476] sm:$0xff]
        %v492 = vld [vmem:[%s2] sm:$0xff]
        %v493 = vld [vmem:[%s2 + $0x8] sm:$0xff]
        %v494 = vld [vmem:[%s2 + $0x10] sm:$0xff]
        %v495 = vld [vmem:[%s2 + $0x18] sm:$0xff]
        %v496 = vld [vmem:[%s3] sm:$0xff]
        %v497 = vld [vmem:[%s3 + $0x8] sm:$0xff]
        %v498 = vld [vmem:[%s3 + $0x10] sm:$0xff]
        %v499 = vld [vmem:[%s3 + $0x18] sm:$0xff]
        %v500 = vld [vmem:[%s3 + $0x20] sm:$0xff]
        %v501 = vld [vmem:[%s3 + $0x28] sm:$0xff]
        %v502 = vld [vmem:[%s3 + $0x30] sm:$0xff]
        %v503 = vld [vmem:[%s3 + $0x38] sm:$0xff]
        %v504 = vld [vmem:[%s3 + $0x40] sm:$0xff]
        %v505 = vld [vmem:[%s3 + $0x48] sm:$0xff]
        %v506 = vld [vmem:[%s3 + $0x50] sm:$0xff]
        %v507 = vld [vmem:[%s3 + $0x58] sm:$0xff]
        %v508 = vld [vmem:[%s3 + $0x60] sm:$0xff]
        %v509 = vld [vmem:[%s3 + $0x68] sm:$0xff]
        %v510 = vld [vmem:[%s3 + $0x70] sm:$0xff]
        %v511 = vld [vmem:[%s3 + $0x78] sm:$0xff]
        %v512 = vld [vmem:[%s3 + $0x80] sm:$0xff]
        %v513 = vld [vmem:[%s3 + $0x88] sm:$0xff]
        %v514 = vld [vmem:[%s3 + $0x90] sm:$0xff]
        %v515 = vld [vmem:[%s3 + $0x98] sm:$0xff]
        %v516 = vld [vmem:[%s3 + $0xa0] sm:$0xff]
        %v517 = vld [vmem:[%s3 + $0xa8] sm:$0xff]
        %v518 = vld [vmem:[%s3 + $0xb0] sm:$0xff]
        %v519 = vld [vmem:[%s3 + $0xb8] sm:$0xff]
        %v520 = vld [vmem:[%s3 + $0xc0] sm:$0xff]
        %v521 = vld [vmem:[%s3 + $0xc8] sm:$0xff]
        %v522 = vld [vmem:[%s3 + $0xd0] sm:$0xff]
        %v523 = vld [vmem:[%s3 + $0xd8] sm:$0xff]
        %v524 = vld [vmem:[%s3 + $0xe0] sm:$0xff]
        %v525 = vld [vmem:[%s3 + $0xe8] sm:$0xff]
        %v526 = vld [vmem:[%s3 + $0xf0] sm:$0xff]
        %v527 = vld [vmem:[%s3 + $0xf8] sm:$0xff]
        %v560 = vunpack.c.l.b16 %v496
        %v561 = vunpack.c.h.b16 %v496
        %v562 = vunpack.c.l.b16 %v497
        %v563 = vunpack.c.h.b16 %v497
        %v564 = vunpack.c.l.b16 %v498
        %v565 = vunpack.c.h.b16 %v498
        %v566 = vunpack.c.l.b16 %v499
        %v567 = vunpack.c.h.b16 %v499
        %v568 = vunpack.c.l.b16 %v500
        %v569 = vunpack.c.h.b16 %v500
        %v570 = vunpack.c.l.b16 %v501
        %v571 = vunpack.c.h.b16 %v501
        %v572 = vunpack.c.l.b16 %v502
        %v573 = vunpack.c.h.b16 %v502
        %v574 = vunpack.c.l.b16 %v503
        %v575 = vunpack.c.h.b16 %v503
        %v576 = vunpack.c.l.b16 %v504
        %v577 = vunpack.c.h.b16 %v504
        %v578 = vunpack.c.l.b16 %v505
        %v579 = vunpack.c.h.b16 %v505
        %v580 = vunpack.c.l.b16 %v506
        %v581 = vunpack.c.h.b16 %v506
        %v582 = vunpack.c.l.b16 %v507
        %v583 = vunpack.c.h.b16 %v507
        %v584 = vunpack.c.l.b16 %v508
        %v585 = vunpack.c.h.b16 %v508
        %v586 = vunpack.c.l.b16 %v509
        %v587 = vunpack.c.h.b16 %v509
        %v588 = vunpack.c.l.b16 %v510
        %v589 = vunpack.c.h.b16 %v510
        %v590 = vunpack.c.l.b16 %v511
        %v591 = vunpack.c.h.b16 %v511
        %v592 = vunpack.c.l.b16 %v512
        %v593 = vunpack.c.h.b16 %v512
        %v594 = vunpack.c.l.b16 %v513
        %v595 = vunpack.c.h.b16 %v513
        %v596 = vunpack.c.l.b16 %v514
        %v597 = vunpack.c.h.b16 %v514
        %v598 = vunpack.c.l.b16 %v515
        %v599 = vunpack.c.h.b16 %v515
        %v600 = vunpack.c.l.b16 %v516
        %v601 = vunpack.c.h.b16 %v516
        %v602 = vunpack.c.l.b16 %v517
        %v603 = vunpack.c.h.b16 %v517
        %v604 = vunpack.c.l.b16 %v518
        %v605 = vunpack.c.h.b16 %v518
        %v606 = vunpack.c.l.b16 %v519
        %v607 = vunpack.c.h.b16 %v519
        %v608 = vunpack.c.l.b16 %v520
        %v609 = vunpack.c.h.b16 %v520
        %v610 = vunpack.c.l.b16 %v521
        %v611 = vunpack.c.h.b16 %v521
        %v612 = vunpack.c.l.b16 %v522
        %v613 = vunpack.c.h.b16 %v522
        %v614 = vunpack.c.l.b16 %v523
        %v615 = vunpack.c.h.b16 %v523
        %v616 = vunpack.c.l.b16 %v524
        %v617 = vunpack.c.h.b16 %v524
        %v618 = vunpack.c.l.b16 %v525
        %v619 = vunpack.c.h.b16 %v525
        %v620 = vunpack.c.l.b16 %v526
        %v621 = vunpack.c.h.b16 %v526
        %v622 = vunpack.c.l.b16 %v527
        %v623 = vunpack.c.h.b16 %v527
        %v624 = vpack.c.b16 %v562, %v560
        %v625 = vpack.c.b16 %v563, %v561
        %v626 = vpack.c.b16 %v566, %v564
        %v627 = vpack.c.b16 %v567, %v565
        %v628 = vpack.c.b16 %v570, %v568
        %v629 = vpack.c.b16 %v571, %v569
        %v630 = vpack.c.b16 %v574, %v572
        %v631 = vpack.c.b16 %v575, %v573
        %v632 = vpack.c.b16 %v578, %v576
        %v633 = vpack.c.b16 %v579, %v577
        %v634 = vpack.c.b16 %v582, %v580
        %v635 = vpack.c.b16 %v583, %v581
        %v636 = vpack.c.b16 %v586, %v584
        %v637 = vpack.c.b16 %v587, %v585
        %v638 = vpack.c.b16 %v590, %v588
        %v639 = vpack.c.b16 %v591, %v589
        %v640 = vpack.c.b16 %v594, %v592
        %v641 = vpack.c.b16 %v595, %v593
        %v642 = vpack.c.b16 %v598, %v596
        %v643 = vpack.c.b16 %v599, %v597
        %v644 = vpack.c.b16 %v602, %v600
        %v645 = vpack.c.b16 %v603, %v601
        %v646 = vpack.c.b16 %v606, %v604
        %v647 = vpack.c.b16 %v607, %v605
        %v648 = vpack.c.b16 %v610, %v608
        %v649 = vpack.c.b16 %v611, %v609
        %v650 = vpack.c.b16 %v614, %v612
        %v651 = vpack.c.b16 %v615, %v613
        %v652 = vpack.c.b16 %v618, %v616
        %v653 = vpack.c.b16 %v619, %v617
        %v654 = vpack.c.b16 %v622, %v620
        %v655 = vpack.c.b16 %v623, %v621
        %688 = vmatprep.subr.bf16.mxu0 %v625
        %689 = vmatpush1.bf16.msra.mxu0 %v624
        %690 = vmatprep.subr.bf16.mxu0 %v627
        %691 = vmatpush1.bf16.msra.mxu0 %v626
        %692 = vmatprep.subr.bf16.mxu0 %v629
        %693 = vmatpush1.bf16.msra.mxu0 %v628
        %694 = vmatprep.subr.bf16.mxu0 %v631
        %695 = vmatpush1.bf16.msra.mxu0 %v630
        %696 = vmatprep.subr.bf16.mxu0 %v633
        %697 = vmatpush1.bf16.msra.mxu0 %v632
        %698 = vmatprep.subr.bf16.mxu0 %v635
        %699 = vmatpush1.bf16.msra.mxu0 %v634
        %700 = vmatprep.subr.bf16.mxu0 %v637
        %701 = vmatpush1.bf16.msra.mxu0 %v636
        %702 = vmatprep.subr.bf16.mxu0 %v639
        %703 = vmatpush1.bf16.msra.mxu0 %v638
        %704 = vmatprep.subr.bf16.mxu0 %v641
        %705 = vmatpush1.bf16.msra.mxu0 %v640
        %706 = vmatprep.subr.bf16.mxu0 %v643
        %707 = vmatpush1.bf16.msra.mxu0 %v642
        %708 = vmatprep.subr.bf16.mxu0 %v645
        %709 = vmatpush1.bf16.msra.mxu0 %v644
        %710 = vmatprep.subr.bf16.mxu0 %v647
        %711 = vmatpush1.bf16.msra.mxu0 %v646
        %712 = vmatprep.subr.bf16.mxu0 %v649
        %713 = vmatpush1.bf16.msra.mxu0 %v648
        %714 = vmatprep.subr.bf16.mxu0 %v651
        %715 = vmatpush1.bf16.msra.mxu0 %v650
        %716 = vmatprep.subr.bf16.mxu0 %v653
        %717 = vmatpush1.bf16.msra.mxu0 %v652
        %718 = vmatprep.subr.bf16.mxu0 %v655
        %719 = vmatpush1.bf16.msra.mxu0 %v654
        %720 = vmatprep.mubr.bf16.mxu0 %v490
        %721 = vmatmul.mubr.bf16.gmra.mrb[0].mxu0 %v489
        %v722 = vpop.f32.mrb[0].mxu0
        %v723 = vadd.f32 0.0, %v722
        %v724 = vpop.f32.mrb[0].mxu0
        %v725 = vadd.f32 0.0, %v724
        %v726 = vpop.f32.mrb[0].mxu0
        %v727 = vpop.f32.mrb[0].mxu0
        %728 = vdwg.mxu0
        %vm729 = vcmask 130048
        %v731 = vsel %vm729, %v491, 0
        %733 = vmatprep.subr.mxu0 %v493
        %734 = vmatpush1.msra.mxu0 %v492
        %735 = vmatprep.subr.mxu0 %v495
        %736 = vmatpush1.msra.mxu0 %v494
        %737 = vmatprep.subr.mxu0 0.0
        %738 = vmatpush1.msra.mxu0 0.0
        %739 = vmatprep.subr.mxu0 0.0
        %740 = vmatpush1.msra.mxu0 0.0
        %741 = vmatprep.subr.mxu0 0.0
        %742 = vmatpush1.msra.mxu0 0.0
        %743 = vmatprep.subr.mxu0 0.0
        %744 = vmatpush1.msra.mxu0 0.0
        %745 = vmatprep.subr.mxu0 0.0
        %746 = vmatpush1.msra.mxu0 0.0
        %747 = vmatprep.subr.mxu0 0.0
        %748 = vmatpush1.msra.mxu0 0.0
        %749 = vmatprep.subr.mxu0 0.0
        %750 = vmatpush1.msra.mxu0 0.0
        %751 = vmatprep.subr.mxu0 0.0
        %752 = vmatpush1.msra.mxu0 0.0
        %753 = vmatprep.subr.mxu0 0.0
        %754 = vmatpush1.msra.mxu0 0.0
        %755 = vmatprep.subr.mxu0 0.0
        %756 = vmatpush1.msra.mxu0 0.0
        %757 = vmatprep.subr.mxu0 0.0
        %758 = vmatpush1.msra.mxu0 0.0
        %759 = vmatprep.subr.mxu0 0.0
        %760 = vmatpush1.msra.mxu0 0.0
        %761 = vmatprep.subr.mxu0 0.0
        %762 = vmatpush1.msra.mxu0 0.0
        %763 = vmatprep.subr.mxu0 0.0
        %764 = vmatpush1.msra.mxu0 0.0
        %765 = vmatprep.subr.mxu0 0.0
        %766 = vmatpush1.msra.mxu0 0.0
        %767 = vmatprep.subr.mxu0 0.0
        %768 = vmatpush1.msra.mxu0 0.0
        %769 = vmatprep.subr.mxu0 0.0
        %770 = vmatpush1.msra.mxu0 0.0
        %771 = vmatprep.subr.mxu0 0.0
        %772 = vmatpush1.msra.mxu0 0.0
        %773 = vmatprep.subr.mxu0 0.0
        %774 = vmatpush1.msra.mxu0 0.0
        %775 = vmatprep.subr.mxu0 0.0
        %776 = vmatpush1.msra.mxu0 0.0
        %777 = vmatprep.subr.mxu0 0.0
        %778 = vmatpush1.msra.mxu0 0.0
        %779 = vmatprep.subr.mxu0 0.0
        %780 = vmatpush1.msra.mxu0 0.0
        %781 = vmatprep.subr.mxu0 0.0
        %782 = vmatpush1.msra.mxu0 0.0
        %783 = vmatprep.subr.mxu0 0.0
        %784 = vmatpush1.msra.mxu0 0.0
        %785 = vmatprep.subr.mxu0 0.0
        %786 = vmatpush1.msra.mxu0 0.0
        %787 = vmatprep.subr.mxu0 0.0
        %788 = vmatpush1.msra.mxu0 0.0
        %789 = vmatprep.subr.mxu0 0.0
        %790 = vmatpush1.msra.mxu0 0.0
        %791 = vmatprep.subr.mxu0 0.0
        %792 = vmatpush1.msra.mxu0 0.0
        %793 = vmatprep.subr.mxu0 0.0
        %794 = vmatpush1.msra.mxu0 0.0
        %795 = vmatprep.subr.mxu0 0.0
        %796 = vmatpush1.msra.mxu0 0.0
        %797 = vmatprep.mubr.f32.mxu0 0.0
        %798 = vmatmul.mubr.f32.gmra.mrb[0].mxu0 %v731
        %v799 = vpop.f32.mrb[0].mxu0
        %v800 = vadd.f32 %v723, %v799
        %v801 = vpop.f32.mrb[0].mxu0
        %v802 = vadd.f32 %v725, %v801
        %803 = vdwg.mxu0
        %v804 = vpack.c.bf16 %v800, %v800
        %v805 = vpack.c.bf16 %v802, %v802
        %v806 = vld [vmem:[%s4] sm:$0x3]
        %v809 = vunpack.c.l.s4 1966171168
        %v810 = vunpack.c.0.s8 %v809
        %v811 = vlaneseq
        %v812 = vshrl.u32 %v811, 7
        %v813 = vsub.s32 %v810, %v812
        %v814 = vrot.slane %v806, %v813
        %v815 = vcombine.high %v814, %v814
        %v817 = vunpack.c.l.s4 1966171168
        %v818 = vunpack.c.0.s8 %v817
        %v819 = vlaneseq
        %v820 = vshrl.u32 %v819, 7
        %v821 = vsub.s32 %v818, %v820
        %v822 = vrot.slane %v814, %v821
        %v824 = vunpack.c.l.s4 1966171168
        %v825 = vunpack.c.0.s8 %v824
        %v826 = vlaneseq
        %v827 = vshrl.u32 %v826, 7
        %v828 = vsub.s32 %v825, %v827
        %v829 = vrot.slane %v815, %v828
        %v831 = vpack.i.b16 %v822, %v822
        %v833 = vlaneseq
        %v834 = vshrl.u32 %v833, 7
        %v835 = vsub.s32 0, %v834
        %v836 = vrot.slane %v831, %v835
        %v838 = vpack.i.b16 %v829, %v829
        %v840 = vlaneseq
        %v841 = vshrl.u32 %v840, 7
        %v842 = vsub.s32 0, %v841
        %v843 = vrot.slane %v838, %v842
        %v844 = vadd.bf16 %v804, %v836
        %v845 = vadd.bf16 %v805, %v843
        %v846 = vmax.bf16 %v844, 0
        %v847 = vmax.bf16 %v845, 0
        %v848 = vld [vmem:[%s5] sm:$0xff]
        %v849 = vld [vmem:[%s5 + $0x8] sm:$0xff]
        %v850 = vld [vmem:[%s5 + $0x10] sm:$0xff]
        %v851 = vld [vmem:[%s5 + $0x18] sm:$0xff]
        %v852 = vld [vmem:[%s5 + $0x20] sm:$0xff]
        %v853 = vld [vmem:[%s5 + $0x28] sm:$0xff]
        %v854 = vld [vmem:[%s5 + $0x30] sm:$0xff]
        %v855 = vld [vmem:[%s5 + $0x38] sm:$0xff]
        %v856 = vld [vmem:[%s5 + $0x40] sm:$0xff]
        %v857 = vld [vmem:[%s5 + $0x48] sm:$0xff]
        %v858 = vld [vmem:[%s5 + $0x50] sm:$0xff]
        %v859 = vld [vmem:[%s5 + $0x58] sm:$0xff]
        %v860 = vld [vmem:[%s5 + $0x60] sm:$0xff]
        %v861 = vld [vmem:[%s5 + $0x68] sm:$0xff]
        %v862 = vld [vmem:[%s5 + $0x70] sm:$0xff]
        %v863 = vld [vmem:[%s5 + $0x78] sm:$0xff]
        %v864 = vld [vmem:[%s5 + $0x80] sm:$0xff]
        %v865 = vld [vmem:[%s5 + $0x88] sm:$0xff]
        %v866 = vld [vmem:[%s5 + $0x90] sm:$0xff]
        %v867 = vld [vmem:[%s5 + $0x98] sm:$0xff]
        %v868 = vld [vmem:[%s5 + $0xa0] sm:$0xff]
        %v869 = vld [vmem:[%s5 + $0xa8] sm:$0xff]
        %v870 = vld [vmem:[%s5 + $0xb0] sm:$0xff]
        %v871 = vld [vmem:[%s5 + $0xb8] sm:$0xff]
        %v872 = vld [vmem:[%s5 + $0xc0] sm:$0xff]
        %v873 = vld [vmem:[%s5 + $0xc8] sm:$0xff]
        %v874 = vld [vmem:[%s5 + $0xd0] sm:$0xff]
        %v875 = vld [vmem:[%s5 + $0xd8] sm:$0xff]
        %v876 = vld [vmem:[%s5 + $0xe0] sm:$0xff]
        %v877 = vld [vmem:[%s5 + $0xe8] sm:$0xff]
        %v878 = vld [vmem:[%s5 + $0xf0] sm:$0xff]
        %v879 = vld [vmem:[%s5 + $0xf8] sm:$0xff]
        %v912 = vunpack.c.l.b16 %v848
        %v913 = vunpack.c.h.b16 %v848
        %v914 = vunpack.c.l.b16 %v849
        %v915 = vunpack.c.h.b16 %v849
        %v916 = vunpack.c.l.b16 %v850
        %v917 = vunpack.c.h.b16 %v850
        %v918 = vunpack.c.l.b16 %v851
        %v919 = vunpack.c.h.b16 %v851
        %v920 = vunpack.c.l.b16 %v852
        %v921 = vunpack.c.h.b16 %v852
        %v922 = vunpack.c.l.b16 %v853
        %v923 = vunpack.c.h.b16 %v853
        %v924 = vunpack.c.l.b16 %v854
        %v925 = vunpack.c.h.b16 %v854
        %v926 = vunpack.c.l.b16 %v855
        %v927 = vunpack.c.h.b16 %v855
        %v928 = vunpack.c.l.b16 %v856
        %v929 = vunpack.c.h.b16 %v856
        %v930 = vunpack.c.l.b16 %v857
        %v931 = vunpack.c.h.b16 %v857
        %v932 = vunpack.c.l.b16 %v858
        %v933 = vunpack.c.h.b16 %v858
        %v934 = vunpack.c.l.b16 %v859
        %v935 = vunpack.c.h.b16 %v859
        %v936 = vunpack.c.l.b16 %v860
        %v937 = vunpack.c.h.b16 %v860
        %v938 = vunpack.c.l.b16 %v861
        %v939 = vunpack.c.h.b16 %v861
        %v940 = vunpack.c.l.b16 %v862
        %v941 = vunpack.c.h.b16 %v862
        %v942 = vunpack.c.l.b16 %v863
        %v943 = vunpack.c.h.b16 %v863
        %v944 = vunpack.c.l.b16 %v864
        %v945 = vunpack.c.h.b16 %v864
        %v946 = vunpack.c.l.b16 %v865
        %v947 = vunpack.c.h.b16 %v865
        %v948 = vunpack.c.l.b16 %v866
        %v949 = vunpack.c.h.b16 %v866
        %v950 = vunpack.c.l.b16 %v867
        %v951 = vunpack.c.h.b16 %v867
        %v952 = vunpack.c.l.b16 %v868
        %v953 = vunpack.c.h.b16 %v868
        %v954 = vunpack.c.l.b16 %v869
        %v955 = vunpack.c.h.b16 %v869
        %v956 = vunpack.c.l.b16 %v870
        %v957 = vunpack.c.h.b16 %v870
        %v958 = vunpack.c.l.b16 %v871
        %v959 = vunpack.c.h.b16 %v871
        %v960 = vunpack.c.l.b16 %v872
        %v961 = vunpack.c.h.b16 %v872
        %v962 = vunpack.c.l.b16 %v873
        %v963 = vunpack.c.h.b16 %v873
        %v964 = vunpack.c.l.b16 %v874
        %v965 = vunpack.c.h.b16 %v874
        %v966 = vunpack.c.l.b16 %v875
        %v967 = vunpack.c.h.b16 %v875
        %v968 = vunpack.c.l.b16 %v876
        %v969 = vunpack.c.h.b16 %v876
        %v970 = vunpack.c.l.b16 %v877
        %v971 = vunpack.c.h.b16 %v877
        %v972 = vunpack.c.l.b16 %v878
        %v973 = vunpack.c.h.b16 %v878
        %v974 = vunpack.c.l.b16 %v879
        %v975 = vunpack.c.h.b16 %v879
        %v976 = vpack.c.b16 %v914, %v912
        %v977 = vpack.c.b16 %v915, %v913
        %v978 = vpack.c.b16 %v918, %v916
        %v979 = vpack.c.b16 %v919, %v917
        %v980 = vpack.c.b16 %v922, %v920
        %v981 = vpack.c.b16 %v923, %v921
        %v982 = vpack.c.b16 %v926, %v924
        %v983 = vpack.c.b16 %v927, %v925
        %v984 = vpack.c.b16 %v930, %v928
        %v985 = vpack.c.b16 %v931, %v929
        %v986 = vpack.c.b16 %v934, %v932
        %v987 = vpack.c.b16 %v935, %v933
        %v988 = vpack.c.b16 %v938, %v936
        %v989 = vpack.c.b16 %v939, %v937
        %v990 = vpack.c.b16 %v942, %v940
        %v991 = vpack.c.b16 %v943, %v941
        %v992 = vpack.c.b16 %v946, %v944
        %v993 = vpack.c.b16 %v947, %v945
        %v994 = vpack.c.b16 %v950, %v948
        %v995 = vpack.c.b16 %v951, %v949
        %v996 = vpack.c.b16 %v954, %v952
        %v997 = vpack.c.b16 %v955, %v953
        %v998 = vpack.c.b16 %v958, %v956
        %v999 = vpack.c.b16 %v959, %v957
        %v1000 = vpack.c.b16 %v962, %v960
        %v1001 = vpack.c.b16 %v963, %v961
        %v1002 = vpack.c.b16 %v966, %v964
        %v1003 = vpack.c.b16 %v967, %v965
        %v1004 = vpack.c.b16 %v970, %v968
        %v1005 = vpack.c.b16 %v971, %v969
        %v1006 = vpack.c.b16 %v974, %v972
        %v1007 = vpack.c.b16 %v975, %v973
        %1040 = vmatprep.subr.bf16.mxu0 %v977
        %1041 = vmatpush1.bf16.msra.mxu0 %v976
        %1042 = vmatprep.subr.bf16.mxu0 %v979
        %1043 = vmatpush1.bf16.msra.mxu0 %v978
        %1044 = vmatprep.subr.bf16.mxu0 %v981
        %1045 = vmatpush1.bf16.msra.mxu0 %v980
        %1046 = vmatprep.subr.bf16.mxu0 %v983
        %1047 = vmatpush1.bf16.msra.mxu0 %v982
        %1048 = vmatprep.subr.bf16.mxu0 %v985
        %1049 = vmatpush1.bf16.msra.mxu0 %v984
        %1050 = vmatprep.subr.bf16.mxu0 %v987
        %1051 = vmatpush1.bf16.msra.mxu0 %v986
        %1052 = vmatprep.subr.bf16.mxu0 %v989
        %1053 = vmatpush1.bf16.msra.mxu0 %v988
        %1054 = vmatprep.subr.bf16.mxu0 %v991
        %1055 = vmatpush1.bf16.msra.mxu0 %v990
        %1056 = vmatprep.subr.bf16.mxu0 %v993
        %1057 = vmatpush1.bf16.msra.mxu0 %v992
        %1058 = vmatprep.subr.bf16.mxu0 %v995
        %1059 = vmatpush1.bf16.msra.mxu0 %v994
        %1060 = vmatprep.subr.bf16.mxu0 %v997
        %1061 = vmatpush1.bf16.msra.mxu0 %v996
        %1062 = vmatprep.subr.bf16.mxu0 %v999
        %1063 = vmatpush1.bf16.msra.mxu0 %v998
        %1064 = vmatprep.subr.bf16.mxu0 %v1001
        %1065 = vmatpush1.bf16.msra.mxu0 %v1000
        %1066 = vmatprep.subr.bf16.mxu0 %v1003
        %1067 = vmatpush1.bf16.msra.mxu0 %v1002
        %1068 = vmatprep.subr.bf16.mxu0 %v1005
        %1069 = vmatpush1.bf16.msra.mxu0 %v1004
        %1070 = vmatprep.subr.bf16.mxu0 %v1007
        %1071 = vmatpush1.bf16.msra.mxu0 %v1006
        %1072 = vmatprep.mubr.bf16.mxu0 %v847
        %1073 = vmatmul.mubr.bf16.gmra.mrb[0].mxu0 %v846
        %v1074 = vpop.f32.mrb[0].mxu0
        %v1075 = vadd.f32 0.0, %v1074
        %v1076 = vpop.f32.mrb[0].mxu0
        %v1077 = vadd.f32 0.0, %v1076
        %v1078 = vpop.f32.mrb[0].mxu0
        %v1079 = vpop.f32.mrb[0].mxu0
        %1080 = vdwg.mxu0
        %v1081 = vpack.c.bf16 %v1075, %v1075
        %v1082 = vpack.c.bf16 %v1077, %v1077
        %v1083 = vld [vmem:[%s6] sm:$0x3]
        %v1086 = vunpack.c.l.s4 1966171168
        %v1087 = vunpack.c.0.s8 %v1086
        %v1088 = vlaneseq
        %v1089 = vshrl.u32 %v1088, 7
        %v1090 = vsub.s32 %v1087, %v1089
        %v1091 = vrot.slane %v1083, %v1090
        %v1092 = vcombine.high %v1091, %v1091
        %v1094 = vunpack.c.l.s4 1966171168
        %v1095 = vunpack.c.0.s8 %v1094
        %v1096 = vlaneseq
        %v1097 = vshrl.u32 %v1096, 7
        %v1098 = vsub.s32 %v1095, %v1097
        %v1099 = vrot.slane %v1091, %v1098
        %v1101 = vunpack.c.l.s4 1966171168
        %v1102 = vunpack.c.0.s8 %v1101
        %v1103 = vlaneseq
        %v1104 = vshrl.u32 %v1103, 7
        %v1105 = vsub.s32 %v1102, %v1104
        %v1106 = vrot.slane %v1092, %v1105
        %v1108 = vpack.i.b16 %v1099, %v1099
        %v1110 = vlaneseq
        %v1111 = vshrl.u32 %v1110, 7
        %v1112 = vsub.s32 0, %v1111
        %v1113 = vrot.slane %v1108, %v1112
        %v1115 = vpack.i.b16 %v1106, %v1106
        %v1117 = vlaneseq
        %v1118 = vshrl.u32 %v1117, 7
        %v1119 = vsub.s32 0, %v1118
        %v1120 = vrot.slane %v1115, %v1119
        %v1121 = vadd.bf16 %v1081, %v1113
        %v1122 = vadd.bf16 %v1082, %v1120
        %v1123 = vmax.bf16 %v1121, 0
        %v1124 = vmax.bf16 %v1122, 0
        %v1125 = vld [vmem:[#allocation2] sm:$0xff]
        %v1126 = vld [vmem:[#allocation2 + $0x8] sm:$0xff]
        %v1127 = vld [vmem:[#allocation2 + $0x10] sm:$0xff]
        %v1128 = vld [vmem:[#allocation2 + $0x18] sm:$0xff]
        %v1129 = vld [vmem:[#allocation2 + $0x20] sm:$0xff]
        %v1130 = vld [vmem:[#allocation2 + $0x28] sm:$0xff]
        %v1131 = vld [vmem:[#allocation2 + $0x30] sm:$0xff]
        %v1132 = vld [vmem:[#allocation2 + $0x38] sm:$0xff]
        %v1133 = vld [vmem:[#allocation2 + $0x40] sm:$0xff]
        %v1134 = vld [vmem:[#allocation2 + $0x48] sm:$0xff]
        %v1135 = vld [vmem:[#allocation2 + $0x50] sm:$0xff]
        %v1136 = vld [vmem:[#allocation2 + $0x58] sm:$0xff]
        %v1137 = vld [vmem:[#allocation2 + $0x60] sm:$0xff]
        %v1138 = vld [vmem:[#allocation2 + $0x68] sm:$0xff]
        %v1139 = vld [vmem:[#allocation2 + $0x70] sm:$0xff]
        %v1140 = vld [vmem:[#allocation2 + $0x78] sm:$0xff]
        %v1141 = vld [vmem:[#allocation2 + $0x80] sm:$0xff]
        %v1142 = vld [vmem:[#allocation2 + $0x88] sm:$0xff]
        %v1143 = vld [vmem:[#allocation2 + $0x90] sm:$0xff]
        %v1144 = vld [vmem:[#allocation2 + $0x98] sm:$0xff]
        %v1145 = vld [vmem:[#allocation2 + $0xa0] sm:$0xff]
        %v1146 = vld [vmem:[#allocation2 + $0xa8] sm:$0xff]
        %v1147 = vld [vmem:[#allocation2 + $0xb0] sm:$0xff]
        %v1148 = vld [vmem:[#allocation2 + $0xb8] sm:$0xff]
        %v1149 = vld [vmem:[#allocation2 + $0xc0] sm:$0xff]
        %v1150 = vld [vmem:[#allocation2 + $0xc8] sm:$0xff]
        %v1151 = vld [vmem:[#allocation2 + $0xd0] sm:$0xff]
        %v1152 = vld [vmem:[#allocation2 + $0xd8] sm:$0xff]
        %v1153 = vld [vmem:[#allocation2 + $0xe0] sm:$0xff]
        %v1154 = vld [vmem:[#allocation2 + $0xe8] sm:$0xff]
        %v1155 = vld [vmem:[#allocation2 + $0xf0] sm:$0xff]
        %v1156 = vld [vmem:[#allocation2 + $0xf8] sm:$0xff]
        %v1189 = vunpack.c.l.b16 %v1125
        %v1190 = vunpack.c.h.b16 %v1125
        %v1191 = vunpack.c.l.b16 %v1126
        %v1192 = vunpack.c.h.b16 %v1126
        %v1193 = vunpack.c.l.b16 %v1127
        %v1194 = vunpack.c.h.b16 %v1127
        %v1195 = vunpack.c.l.b16 %v1128
        %v1196 = vunpack.c.h.b16 %v1128
        %v1197 = vunpack.c.l.b16 %v1129
        %v1198 = vunpack.c.h.b16 %v1129
        %v1199 = vunpack.c.l.b16 %v1130
        %v1200 = vunpack.c.h.b16 %v1130
        %v1201 = vunpack.c.l.b16 %v1131
        %v1202 = vunpack.c.h.b16 %v1131
        %v1203 = vunpack.c.l.b16 %v1132
        %v1204 = vunpack.c.h.b16 %v1132
        %v1205 = vunpack.c.l.b16 %v1133
        %v1206 = vunpack.c.h.b16 %v1133
        %v1207 = vunpack.c.l.b16 %v1134
        %v1208 = vunpack.c.h.b16 %v1134
        %v1209 = vunpack.c.l.b16 %v1135
        %v1210 = vunpack.c.h.b16 %v1135
        %v1211 = vunpack.c.l.b16 %v1136
        %v1212 = vunpack.c.h.b16 %v1136
        %v1213 = vunpack.c.l.b16 %v1137
        %v1214 = vunpack.c.h.b16 %v1137
        %v1215 = vunpack.c.l.b16 %v1138
        %v1216 = vunpack.c.h.b16 %v1138
        %v1217 = vunpack.c.l.b16 %v1139
        %v1218 = vunpack.c.h.b16 %v1139
        %v1219 = vunpack.c.l.b16 %v1140
        %v1220 = vunpack.c.h.b16 %v1140
        %v1221 = vunpack.c.l.b16 %v1141
        %v1222 = vunpack.c.h.b16 %v1141
        %v1223 = vunpack.c.l.b16 %v1142
        %v1224 = vunpack.c.h.b16 %v1142
        %v1225 = vunpack.c.l.b16 %v1143
        %v1226 = vunpack.c.h.b16 %v1143
        %v1227 = vunpack.c.l.b16 %v1144
        %v1228 = vunpack.c.h.b16 %v1144
        %v1229 = vunpack.c.l.b16 %v1145
        %v1230 = vunpack.c.h.b16 %v1145
        %v1231 = vunpack.c.l.b16 %v1146
        %v1232 = vunpack.c.h.b16 %v1146
        %v1233 = vunpack.c.l.b16 %v1147
        %v1234 = vunpack.c.h.b16 %v1147
        %v1235 = vunpack.c.l.b16 %v1148
        %v1236 = vunpack.c.h.b16 %v1148
        %v1237 = vunpack.c.l.b16 %v1149
        %v1238 = vunpack.c.h.b16 %v1149
        %v1239 = vunpack.c.l.b16 %v1150
        %v1240 = vunpack.c.h.b16 %v1150
        %v1241 = vunpack.c.l.b16 %v1151
        %v1242 = vunpack.c.h.b16 %v1151
        %v1243 = vunpack.c.l.b16 %v1152
        %v1244 = vunpack.c.h.b16 %v1152
        %v1245 = vunpack.c.l.b16 %v1153
        %v1246 = vunpack.c.h.b16 %v1153
        %v1247 = vunpack.c.l.b16 %v1154
        %v1248 = vunpack.c.h.b16 %v1154
        %v1249 = vunpack.c.l.b16 %v1155
        %v1250 = vunpack.c.h.b16 %v1155
        %v1251 = vunpack.c.l.b16 %v1156
        %v1252 = vunpack.c.h.b16 %v1156
        %v1253 = vpack.c.b16 %v1191, %v1189
        %v1254 = vpack.c.b16 %v1192, %v1190
        %v1255 = vpack.c.b16 %v1195, %v1193
        %v1256 = vpack.c.b16 %v1196, %v1194
        %v1257 = vpack.c.b16 %v1199, %v1197
        %v1258 = vpack.c.b16 %v1200, %v1198
        %v1259 = vpack.c.b16 %v1203, %v1201
        %v1260 = vpack.c.b16 %v1204, %v1202
        %v1261 = vpack.c.b16 %v1207, %v1205
        %v1262 = vpack.c.b16 %v1208, %v1206
        %v1263 = vpack.c.b16 %v1211, %v1209
        %v1264 = vpack.c.b16 %v1212, %v1210
        %v1265 = vpack.c.b16 %v1215, %v1213
        %v1266 = vpack.c.b16 %v1216, %v1214
        %v1267 = vpack.c.b16 %v1219, %v1217
        %v1268 = vpack.c.b16 %v1220, %v1218
        %v1269 = vpack.c.b16 %v1223, %v1221
        %v1270 = vpack.c.b16 %v1224, %v1222
        %v1271 = vpack.c.b16 %v1227, %v1225
        %v1272 = vpack.c.b16 %v1228, %v1226
        %v1273 = vpack.c.b16 %v1231, %v1229
        %v1274 = vpack.c.b16 %v1232, %v1230
        %v1275 = vpack.c.b16 %v1235, %v1233
        %v1276 = vpack.c.b16 %v1236, %v1234
        %v1277 = vpack.c.b16 %v1239, %v1237
        %v1278 = vpack.c.b16 %v1240, %v1238
        %v1279 = vpack.c.b16 %v1243, %v1241
        %v1280 = vpack.c.b16 %v1244, %v1242
        %v1281 = vpack.c.b16 %v1247, %v1245
        %v1282 = vpack.c.b16 %v1248, %v1246
        %v1283 = vpack.c.b16 %v1251, %v1249
        %v1284 = vpack.c.b16 %v1252, %v1250
        %1317 = vmatprep.subr.bf16.mxu0 %v1254
        %1318 = vmatpush1.bf16.msra.mxu0 %v1253
        %1319 = vmatprep.subr.bf16.mxu0 %v1256
        %1320 = vmatpush1.bf16.msra.mxu0 %v1255
        %1321 = vmatprep.subr.bf16.mxu0 %v1258
        %1322 = vmatpush1.bf16.msra.mxu0 %v1257
        %1323 = vmatprep.subr.bf16.mxu0 %v1260
        %1324 = vmatpush1.bf16.msra.mxu0 %v1259
        %1325 = vmatprep.subr.bf16.mxu0 %v1262
        %1326 = vmatpush1.bf16.msra.mxu0 %v1261
        %1327 = vmatprep.subr.bf16.mxu0 %v1264
        %1328 = vmatpush1.bf16.msra.mxu0 %v1263
        %1329 = vmatprep.subr.bf16.mxu0 %v1266
        %1330 = vmatpush1.bf16.msra.mxu0 %v1265
        %1331 = vmatprep.subr.bf16.mxu0 %v1268
        %1332 = vmatpush1.bf16.msra.mxu0 %v1267
        %1333 = vmatprep.subr.bf16.mxu0 %v1270
        %1334 = vmatpush1.bf16.msra.mxu0 %v1269
        %1335 = vmatprep.subr.bf16.mxu0 %v1272
        %1336 = vmatpush1.bf16.msra.mxu0 %v1271
        %1337 = vmatprep.subr.bf16.mxu0 %v1274
        %1338 = vmatpush1.bf16.msra.mxu0 %v1273
        %1339 = vmatprep.subr.bf16.mxu0 %v1276
        %1340 = vmatpush1.bf16.msra.mxu0 %v1275
        %1341 = vmatprep.subr.bf16.mxu0 %v1278
        %1342 = vmatpush1.bf16.msra.mxu0 %v1277
        %1343 = vmatprep.subr.bf16.mxu0 %v1280
        %1344 = vmatpush1.bf16.msra.mxu0 %v1279
        %1345 = vmatprep.subr.bf16.mxu0 %v1282
        %1346 = vmatpush1.bf16.msra.mxu0 %v1281
        %1347 = vmatprep.subr.bf16.mxu0 %v1284
        %1348 = vmatpush1.bf16.msra.mxu0 %v1283
        %1349 = vmatprep.mubr.bf16.mxu0 %v1124
        %1350 = vmatmul.mubr.bf16.gmra.mrb[0].mxu0 %v1123
        %v1351 = vpop.f32.mrb[0].mxu0
        %v1352 = vadd.f32 0.0, %v1351
        %v1353 = vpop.f32.mrb[0].mxu0
        %v1354 = vadd.f32 0.0, %v1353
        %v1355 = vpop.f32.mrb[0].mxu0
        %v1356 = vpop.f32.mrb[0].mxu0
        %1357 = vdwg.mxu0
        %v1358 = vpack.c.bf16 %v1352, %v1352
        %v1359 = vpack.c.bf16 %v1354, %v1354
        %v1360 = vld [vmem:[%s8] sm:$0x3]
        %v1363 = vunpack.c.l.s4 1966171168
        %v1364 = vunpack.c.0.s8 %v1363
        %v1365 = vlaneseq
        %v1366 = vshrl.u32 %v1365, 7
        %v1367 = vsub.s32 %v1364, %v1366
        %v1368 = vrot.slane %v1360, %v1367
        %v1369 = vcombine.high %v1368, %v1368
        %v1371 = vunpack.c.l.s4 1966171168
        %v1372 = vunpack.c.0.s8 %v1371
        %v1373 = vlaneseq
        %v1374 = vshrl.u32 %v1373, 7
        %v1375 = vsub.s32 %v1372, %v1374
        %v1376 = vrot.slane %v1368, %v1375
        %v1378 = vunpack.c.l.s4 1966171168
        %v1379 = vunpack.c.0.s8 %v1378
        %v1380 = vlaneseq
        %v1381 = vshrl.u32 %v1380, 7
        %v1382 = vsub.s32 %v1379, %v1381
        %v1383 = vrot.slane %v1369, %v1382
        %v1385 = vpack.i.b16 %v1376, %v1376
        %v1387 = vlaneseq
        %v1388 = vshrl.u32 %v1387, 7
        %v1389 = vsub.s32 0, %v1388
        %v1390 = vrot.slane %v1385, %v1389
        %v1392 = vpack.i.b16 %v1383, %v1383
        %v1394 = vlaneseq
        %v1395 = vshrl.u32 %v1394, 7
        %v1396 = vsub.s32 0, %v1395
        %v1397 = vrot.slane %v1392, %v1396
        %v1398 = vadd.bf16 %v1358, %v1390
        %v1399 = vadd.bf16 %v1359, %v1397
        %v1400 = vmax.bf16 %v1398, 0
        %v1401 = vmax.bf16 %v1399, 0
        %v1402 = vld [vmem:[#allocation4] sm:$0xff]
        %v1403 = vld [vmem:[#allocation4 + $0x8] sm:$0xff]
        %v1404 = vld [vmem:[#allocation4 + $0x10] sm:$0xff]
        %v1405 = vld [vmem:[#allocation4 + $0x18] sm:$0xff]
        %v1406 = vld [vmem:[#allocation4 + $0x20] sm:$0xff]
        %v1407 = vld [vmem:[#allocation4 + $0x28] sm:$0xff]
        %v1408 = vld [vmem:[#allocation4 + $0x30] sm:$0xff]
        %v1409 = vld [vmem:[#allocation4 + $0x38] sm:$0xff]
        %v1410 = vld [vmem:[#allocation4 + $0x40] sm:$0xff]
        %v1411 = vld [vmem:[#allocation4 + $0x48] sm:$0xff]
        %v1412 = vld [vmem:[#allocation4 + $0x50] sm:$0xff]
        %v1413 = vld [vmem:[#allocation4 + $0x58] sm:$0xff]
        %v1414 = vld [vmem:[#allocation4 + $0x60] sm:$0xff]
        %v1415 = vld [vmem:[#allocation4 + $0x68] sm:$0xff]
        %v1416 = vld [vmem:[#allocation4 + $0x70] sm:$0xff]
        %v1417 = vld [vmem:[#allocation4 + $0x78] sm:$0xff]
        %v1418 = vld [vmem:[#allocation4 + $0x80] sm:$0xff]
        %v1419 = vld [vmem:[#allocation4 + $0x88] sm:$0xff]
        %v1420 = vld [vmem:[#allocation4 + $0x90] sm:$0xff]
        %v1421 = vld [vmem:[#allocation4 + $0x98] sm:$0xff]
        %v1422 = vld [vmem:[#allocation4 + $0xa0] sm:$0xff]
        %v1423 = vld [vmem:[#allocation4 + $0xa8] sm:$0xff]
        %v1424 = vld [vmem:[#allocation4 + $0xb0] sm:$0xff]
        %v1425 = vld [vmem:[#allocation4 + $0xb8] sm:$0xff]
        %v1426 = vld [vmem:[#allocation4 + $0xc0] sm:$0xff]
        %v1427 = vld [vmem:[#allocation4 + $0xc8] sm:$0xff]
        %v1428 = vld [vmem:[#allocation4 + $0xd0] sm:$0xff]
        %v1429 = vld [vmem:[#allocation4 + $0xd8] sm:$0xff]
        %v1430 = vld [vmem:[#allocation4 + $0xe0] sm:$0xff]
        %v1431 = vld [vmem:[#allocation4 + $0xe8] sm:$0xff]
        %v1432 = vld [vmem:[#allocation4 + $0xf0] sm:$0xff]
        %v1433 = vld [vmem:[#allocation4 + $0xf8] sm:$0xff]
        %v1466 = vunpack.c.l.b16 %v1402
        %v1467 = vunpack.c.h.b16 %v1402
        %v1468 = vunpack.c.l.b16 %v1403
        %v1469 = vunpack.c.h.b16 %v1403
        %v1470 = vunpack.c.l.b16 %v1404
        %v1471 = vunpack.c.h.b16 %v1404
        %v1472 = vunpack.c.l.b16 %v1405
        %v1473 = vunpack.c.h.b16 %v1405
        %v1474 = vunpack.c.l.b16 %v1406
        %v1475 = vunpack.c.h.b16 %v1406
        %v1476 = vunpack.c.l.b16 %v1407
        %v1477 = vunpack.c.h.b16 %v1407
        %v1478 = vunpack.c.l.b16 %v1408
        %v1479 = vunpack.c.h.b16 %v1408
        %v1480 = vunpack.c.l.b16 %v1409
        %v1481 = vunpack.c.h.b16 %v1409
        %v1482 = vunpack.c.l.b16 %v1410
        %v1483 = vunpack.c.h.b16 %v1410
        %v1484 = vunpack.c.l.b16 %v1411
        %v1485 = vunpack.c.h.b16 %v1411
        %v1486 = vunpack.c.l.b16 %v1412
        %v1487 = vunpack.c.h.b16 %v1412
        %v1488 = vunpack.c.l.b16 %v1413
        %v1489 = vunpack.c.h.b16 %v1413
        %v1490 = vunpack.c.l.b16 %v1414
        %v1491 = vunpack.c.h.b16 %v1414
        %v1492 = vunpack.c.l.b16 %v1415
        %v1493 = vunpack.c.h.b16 %v1415
        %v1494 = vunpack.c.l.b16 %v1416
        %v1495 = vunpack.c.h.b16 %v1416
        %v1496 = vunpack.c.l.b16 %v1417
        %v1497 = vunpack.c.h.b16 %v1417
        %v1498 = vunpack.c.l.b16 %v1418
        %v1499 = vunpack.c.h.b16 %v1418
        %v1500 = vunpack.c.l.b16 %v1419
        %v1501 = vunpack.c.h.b16 %v1419
        %v1502 = vunpack.c.l.b16 %v1420
        %v1503 = vunpack.c.h.b16 %v1420
        %v1504 = vunpack.c.l.b16 %v1421
        %v1505 = vunpack.c.h.b16 %v1421
        %v1506 = vunpack.c.l.b16 %v1422
        %v1507 = vunpack.c.h.b16 %v1422
        %v1508 = vunpack.c.l.b16 %v1423
        %v1509 = vunpack.c.h.b16 %v1423
        %v1510 = vunpack.c.l.b16 %v1424
        %v1511 = vunpack.c.h.b16 %v1424
        %v1512 = vunpack.c.l.b16 %v1425
        %v1513 = vunpack.c.h.b16 %v1425
        %v1514 = vunpack.c.l.b16 %v1426
        %v1515 = vunpack.c.h.b16 %v1426
        %v1516 = vunpack.c.l.b16 %v1427
        %v1517 = vunpack.c.h.b16 %v1427
        %v1518 = vunpack.c.l.b16 %v1428
        %v1519 = vunpack.c.h.b16 %v1428
        %v1520 = vunpack.c.l.b16 %v1429
        %v1521 = vunpack.c.h.b16 %v1429
        %v1522 = vunpack.c.l.b16 %v1430
        %v1523 = vunpack.c.h.b16 %v1430
        %v1524 = vunpack.c.l.b16 %v1431
        %v1525 = vunpack.c.h.b16 %v1431
        %v1526 = vunpack.c.l.b16 %v1432
        %v1527 = vunpack.c.h.b16 %v1432
        %v1528 = vunpack.c.l.b16 %v1433
        %v1529 = vunpack.c.h.b16 %v1433
        %v1530 = vpack.c.b16 %v1468, %v1466
        %v1531 = vpack.c.b16 %v1469, %v1467
        %v1532 = vpack.c.b16 %v1472, %v1470
        %v1533 = vpack.c.b16 %v1473, %v1471
        %v1534 = vpack.c.b16 %v1476, %v1474
        %v1535 = vpack.c.b16 %v1477, %v1475
        %v1536 = vpack.c.b16 %v1480, %v1478
        %v1537 = vpack.c.b16 %v1481, %v1479
        %v1538 = vpack.c.b16 %v1484, %v1482
        %v1539 = vpack.c.b16 %v1485, %v1483
        %v1540 = vpack.c.b16 %v1488, %v1486
        %v1541 = vpack.c.b16 %v1489, %v1487
        %v1542 = vpack.c.b16 %v1492, %v1490
        %v1543 = vpack.c.b16 %v1493, %v1491
        %v1544 = vpack.c.b16 %v1496, %v1494
        %v1545 = vpack.c.b16 %v1497, %v1495
        %v1546 = vpack.c.b16 %v1500, %v1498
        %v1547 = vpack.c.b16 %v1501, %v1499
        %v1548 = vpack.c.b16 %v1504, %v1502
        %v1549 = vpack.c.b16 %v1505, %v1503
        %v1550 = vpack.c.b16 %v1508, %v1506
        %v1551 = vpack.c.b16 %v1509, %v1507
        %v1552 = vpack.c.b16 %v1512, %v1510
        %v1553 = vpack.c.b16 %v1513, %v1511
        %v1554 = vpack.c.b16 %v1516, %v1514
        %v1555 = vpack.c.b16 %v1517, %v1515
        %v1556 = vpack.c.b16 %v1520, %v1518
        %v1557 = vpack.c.b16 %v1521, %v1519
        %v1558 = vpack.c.b16 %v1524, %v1522
        %v1559 = vpack.c.b16 %v1525, %v1523
        %v1560 = vpack.c.b16 %v1528, %v1526
        %v1561 = vpack.c.b16 %v1529, %v1527
        %1594 = vmatprep.subr.bf16.mxu0 %v1531
        %1595 = vmatpush1.bf16.msra.mxu0 %v1530
        %1596 = vmatprep.subr.bf16.mxu0 %v1533
        %1597 = vmatpush1.bf16.msra.mxu0 %v1532
        %1598 = vmatprep.subr.bf16.mxu0 %v1535
        %1599 = vmatpush1.bf16.msra.mxu0 %v1534
        %1600 = vmatprep.subr.bf16.mxu0 %v1537
        %1601 = vmatpush1.bf16.msra.mxu0 %v1536
        %1602 = vmatprep.subr.bf16.mxu0 %v1539
        %1603 = vmatpush1.bf16.msra.mxu0 %v1538
        %1604 = vmatprep.subr.bf16.mxu0 %v1541
        %1605 = vmatpush1.bf16.msra.mxu0 %v1540
        %1606 = vmatprep.subr.bf16.mxu0 %v1543
        %1607 = vmatpush1.bf16.msra.mxu0 %v1542
        %1608 = vmatprep.subr.bf16.mxu0 %v1545
        %1609 = vmatpush1.bf16.msra.mxu0 %v1544
        %1610 = vmatprep.subr.bf16.mxu0 %v1547
        %1611 = vmatpush1.bf16.msra.mxu0 %v1546
        %1612 = vmatprep.subr.bf16.mxu0 %v1549
        %1613 = vmatpush1.bf16.msra.mxu0 %v1548
        %1614 = vmatprep.subr.bf16.mxu0 %v1551
        %1615 = vmatpush1.bf16.msra.mxu0 %v1550
        %1616 = vmatprep.subr.bf16.mxu0 %v1553
        %1617 = vmatpush1.bf16.msra.mxu0 %v1552
        %1618 = vmatprep.subr.bf16.mxu0 %v1555
        %1619 = vmatpush1.bf16.msra.mxu0 %v1554
        %1620 = vmatprep.subr.bf16.mxu0 %v1557
        %1621 = vmatpush1.bf16.msra.mxu0 %v1556
        %1622 = vmatprep.subr.bf16.mxu0 %v1559
        %1623 = vmatpush1.bf16.msra.mxu0 %v1558
        %1624 = vmatprep.subr.bf16.mxu0 %v1561
        %1625 = vmatpush1.bf16.msra.mxu0 %v1560
        %1626 = vmatprep.mubr.bf16.mxu0 %v1401
        %1627 = vmatmul.mubr.bf16.gmra.mrb[0].mxu0 %v1400
        %v1628 = vpop.f32.mrb[0].mxu0
        %v1629 = vadd.f32 0.0, %v1628
        %v1630 = vpop.f32.mrb[0].mxu0
        %v1631 = vadd.f32 0.0, %v1630
        %v1632 = vpop.f32.mrb[0].mxu0
        %v1633 = vpop.f32.mrb[0].mxu0
        %1634 = vdwg.mxu0
        %v1635 = vpack.c.bf16 %v1629, %v1629
        %v1636 = vpack.c.bf16 %v1631, %v1631
        %v1637 = vld [vmem:[%s10] sm:$0x3]
        %v1640 = vunpack.c.l.s4 1966171168
        %v1641 = vunpack.c.0.s8 %v1640
        %v1642 = vlaneseq
        %v1643 = vshrl.u32 %v1642, 7
        %v1644 = vsub.s32 %v1641, %v1643
        %v1645 = vrot.slane %v1637, %v1644
        %v1646 = vcombine.high %v1645, %v1645
        %v1648 = vunpack.c.l.s4 1966171168
        %v1649 = vunpack.c.0.s8 %v1648
        %v1650 = vlaneseq
        %v1651 = vshrl.u32 %v1650, 7
        %v1652 = vsub.s32 %v1649, %v1651
        %v1653 = vrot.slane %v1645, %v1652
        %v1655 = vunpack.c.l.s4 1966171168
        %v1656 = vunpack.c.0.s8 %v1655
        %v1657 = vlaneseq
        %v1658 = vshrl.u32 %v1657, 7
        %v1659 = vsub.s32 %v1656, %v1658
        %v1660 = vrot.slane %v1646, %v1659
        %v1662 = vpack.i.b16 %v1653, %v1653
        %v1664 = vlaneseq
        %v1665 = vshrl.u32 %v1664, 7
        %v1666 = vsub.s32 0, %v1665
        %v1667 = vrot.slane %v1662, %v1666
        %v1669 = vpack.i.b16 %v1660, %v1660
        %v1671 = vlaneseq
        %v1672 = vshrl.u32 %v1671, 7
        %v1673 = vsub.s32 0, %v1672
        %v1674 = vrot.slane %v1669, %v1673
        %v1675 = vadd.bf16 %v1635, %v1667
        %v1676 = vadd.bf16 %v1636, %v1674
        %v1677 = vmax.bf16 %v1675, 0
        %v1678 = vmax.bf16 %v1676, 0
        %v1679 = vld [vmem:[%s11] sm:$0xf]
        %v1680 = vld [vmem:[%s11 + $0x4] sm:$0xf]
        %v1681 = vld [vmem:[%s11 + $0x8] sm:$0xf]
        %v1682 = vld [vmem:[%s11 + $0xc] sm:$0xf]
        %v1683 = vld [vmem:[%s11 + $0x10] sm:$0xf]
        %v1684 = vld [vmem:[%s11 + $0x14] sm:$0xf]
        %v1685 = vld [vmem:[%s11 + $0x18] sm:$0xf]
        %v1686 = vld [vmem:[%s11 + $0x1c] sm:$0xf]
        %v1687 = vld [vmem:[%s11 + $0x20] sm:$0xf]
        %v1688 = vld [vmem:[%s11 + $0x24] sm:$0xf]
        %v1689 = vld [vmem:[%s11 + $0x28] sm:$0xf]
        %v1690 = vld [vmem:[%s11 + $0x2c] sm:$0xf]
        %v1691 = vld [vmem:[%s11 + $0x30] sm:$0xf]
        %v1692 = vld [vmem:[%s11 + $0x34] sm:$0xf]
        %v1693 = vld [vmem:[%s11 + $0x38] sm:$0xf]
        %v1694 = vld [vmem:[%s11 + $0x3c] sm:$0xf]
        %v1695 = vld [vmem:[%s11 + $0x40] sm:$0xf]
        %v1696 = vld [vmem:[%s11 + $0x44] sm:$0xf]
        %v1697 = vld [vmem:[%s11 + $0x48] sm:$0xf]
        %v1698 = vld [vmem:[%s11 + $0x4c] sm:$0xf]
        %v1699 = vld [vmem:[%s11 + $0x50] sm:$0xf]
        %v1700 = vld [vmem:[%s11 + $0x54] sm:$0xf]
        %v1701 = vld [vmem:[%s11 + $0x58] sm:$0xf]
        %v1702 = vld [vmem:[%s11 + $0x5c] sm:$0xf]
        %v1703 = vld [vmem:[%s11 + $0x60] sm:$0xf]
        %v1704 = vld [vmem:[%s11 + $0x64] sm:$0xf]
        %v1705 = vld [vmem:[%s11 + $0x68] sm:$0xf]
        %v1706 = vld [vmem:[%s11 + $0x6c] sm:$0xf]
        %v1707 = vld [vmem:[%s11 + $0x70] sm:$0xf]
        %v1708 = vld [vmem:[%s11 + $0x74] sm:$0xf]
        %v1709 = vld [vmem:[%s11 + $0x78] sm:$0xf]
        %v1710 = vld [vmem:[%s11 + $0x7c] sm:$0xf]
        %v1711 = vld [vmem:[%s12] sm:$0x1]
        %v1713 = vlaneseq
        %v1714 = vshrl.u32 %v1713, 7
        %v1715 = vsub.s32 0, %v1714
        %v1716 = vrot.slane %v1711, %v1715
        %v1750 = vunpack.c.l.b16 %v1679
        %v1751 = vunpack.c.l.b16 %v1680
        %v1752 = vunpack.c.l.b16 %v1681
        %v1753 = vunpack.c.l.b16 %v1682
        %v1754 = vunpack.c.l.b16 %v1683
        %v1755 = vunpack.c.l.b16 %v1684
        %v1756 = vunpack.c.l.b16 %v1685
        %v1757 = vunpack.c.l.b16 %v1686
        %v1758 = vunpack.c.l.b16 %v1687
        %v1759 = vunpack.c.l.b16 %v1688
        %v1760 = vunpack.c.l.b16 %v1689
        %v1761 = vunpack.c.l.b16 %v1690
        %v1762 = vunpack.c.l.b16 %v1691
        %v1763 = vunpack.c.l.b16 %v1692
        %v1764 = vunpack.c.l.b16 %v1693
        %v1765 = vunpack.c.l.b16 %v1694
        %v1766 = vunpack.c.l.b16 %v1695
        %v1767 = vunpack.c.l.b16 %v1696
        %v1768 = vunpack.c.l.b16 %v1697
        %v1769 = vunpack.c.l.b16 %v1698
        %v1770 = vunpack.c.l.b16 %v1699
        %v1771 = vunpack.c.l.b16 %v1700
        %v1772 = vunpack.c.l.b16 %v1701
        %v1773 = vunpack.c.l.b16 %v1702
        %v1774 = vunpack.c.l.b16 %v1703
        %v1775 = vunpack.c.l.b16 %v1704
        %v1776 = vunpack.c.l.b16 %v1705
        %v1777 = vunpack.c.l.b16 %v1706
        %v1778 = vunpack.c.l.b16 %v1707
        %v1779 = vunpack.c.l.b16 %v1708
        %v1780 = vunpack.c.l.b16 %v1709
        %v1781 = vunpack.c.l.b16 %v1710
        %v1782 = vpack.c.b16 %v1751, %v1750
        %v1783 = vpack.c.b16 %v1753, %v1752
        %v1784 = vpack.c.b16 %v1755, %v1754
        %v1785 = vpack.c.b16 %v1757, %v1756
        %v1786 = vpack.c.b16 %v1759, %v1758
        %v1787 = vpack.c.b16 %v1761, %v1760
        %v1788 = vpack.c.b16 %v1763, %v1762
        %v1789 = vpack.c.b16 %v1765, %v1764
        %v1790 = vpack.c.b16 %v1767, %v1766
        %v1791 = vpack.c.b16 %v1769, %v1768
        %v1792 = vpack.c.b16 %v1771, %v1770
        %v1793 = vpack.c.b16 %v1773, %v1772
        %v1794 = vpack.c.b16 %v1775, %v1774
        %v1795 = vpack.c.b16 %v1777, %v1776
        %v1796 = vpack.c.b16 %v1779, %v1778
        %v1797 = vpack.c.b16 %v1781, %v1780
        %1814 = vmatprep.subr.bf16.mxu0 0
        %1815 = vmatpush1.bf16.msra.mxu0 %v1782
        %1816 = vmatprep.subr.bf16.mxu0 0
        %1817 = vmatpush1.bf16.msra.mxu0 %v1783
        %1818 = vmatprep.subr.bf16.mxu0 0
        %1819 = vmatpush1.bf16.msra.mxu0 %v1784
        %1820 = vmatprep.subr.bf16.mxu0 0
        %1821 = vmatpush1.bf16.msra.mxu0 %v1785
        %1822 = vmatprep.subr.bf16.mxu0 0
        %1823 = vmatpush1.bf16.msra.mxu0 %v1786
        %1824 = vmatprep.subr.bf16.mxu0 0
        %1825 = vmatpush1.bf16.msra.mxu0 %v1787
        %1826 = vmatprep.subr.bf16.mxu0 0
        %1827 = vmatpush1.bf16.msra.mxu0 %v1788
        %1828 = vmatprep.subr.bf16.mxu0 0
        %1829 = vmatpush1.bf16.msra.mxu0 %v1789
        %1830 = vmatprep.subr.bf16.mxu0 0
        %1831 = vmatpush1.bf16.msra.mxu0 %v1790
        %1832 = vmatprep.subr.bf16.mxu0 0
        %1833 = vmatpush1.bf16.msra.mxu0 %v1791
        %1834 = vmatprep.subr.bf16.mxu0 0
        %1835 = vmatpush1.bf16.msra.mxu0 %v1792
        %1836 = vmatprep.subr.bf16.mxu0 0
        %1837 = vmatpush1.bf16.msra.mxu0 %v1793
        %1838 = vmatprep.subr.bf16.mxu0 0
        %1839 = vmatpush1.bf16.msra.mxu0 %v1794
        %1840 = vmatprep.subr.bf16.mxu0 0
        %1841 = vmatpush1.bf16.msra.mxu0 %v1795
        %1842 = vmatprep.subr.bf16.mxu0 0
        %1843 = vmatpush1.bf16.msra.mxu0 %v1796
        %1844 = vmatprep.subr.bf16.mxu0 0
        %1845 = vmatpush1.bf16.msra.mxu0 %v1797
        %1846 = vmatprep.mubr.bf16.mxu0 %v1678
        %1847 = vmatmul.mubr.bf16.gmra.mrb[0].mxu0 %v1677
        %v1848 = vpop.f32.mrb[0].mxu0
        %v1849 = vadd.f32 %v1716, %v1848
        %v1850 = vpop.f32.mrb[0].mxu0
        %v1851 = vpop.f32.mrb[0].mxu0
        %v1852 = vpop.f32.mrb[0].mxu0
        %1853 = vdwg.mxu0
        %v1854 = vsub.f32 0.0, %v1849
        %v1855 = vmul.f32 %v1854, 1.442695
        %v1856 = vpow.pop %v1855
        %v1857 = vadd.f32 %v1856, 1.0
        %v1858 = vrcp.pop %v1857
        %vm1859 = vcmask 64512
        %1860 = vst.msk [vmem:[%s485] sm:$0xff] %vm1859, %v1858
        %p1861 = scmp.lt.s32.totalorder %s26, 1
        %s1862 = scalar_select %p1861, %s26, 1
        %s1863 = smul.addr %s1862, 8
        %s1864 = scalar_lea.vmem %s13, %s1863
        // Predicated region
        $region81: #{color_network_forward.1} parent=71 // pred_check
          %p1865 = pneg %p327
        $region82: #{color_network_forward.1} parent=71 // pred_check_branch
          %1867 = sbr.rel (%p1865) target = $region84
        $region83: #{color_network_forward.1} parent=71 // pred_region
          _
        $region84: #{color_network_forward.1} parent=71 // pred_fallthru
          _
      $region72: #{color_network_forward.1} parent=5 // pred_fallthru
        _
      %p1868 = scmp.le.s32.totalorder 2, %s21
      // Predicated region
      $region85: #{color_network_forward.1} parent=5 // pred_check
        %p1869 = pneg %p1868
      $region86: #{color_network_forward.1} parent=5 // pred_check_branch
        %1871 = sbr.rel (%p1869) target = $region88
      $region87: #{color_network_forward.1} parent=5 // pred_region
        %s1872 = ssub.s32 %s21, 2
        // Predicated region
        $region89: #{color_network_forward.1} parent=87 // pred_check
          %p1873 = pneg %p333
        $region90: #{color_network_forward.1} parent=87 // pred_check_branch
          %1875 = sbr.rel (%p1873) target = $region92
        $region91: #{color_network_forward.1} parent=87 // pred_region
          %p1876 = scmp.lt.s32.totalorder %s27, 1
          %s1877 = scalar_select %p1876, %s27, 1
          %s1878 = smul.addr %s1877, 8
          %s1879 = scalar_lea.vmem %s13, %s1878
        $region92: #{color_network_forward.1} parent=87 // pred_fallthru
          _
      $region88: #{color_network_forward.1} parent=5 // pred_fallthru
        _
    $region6: #{color_network_forward.1} parent=1 // loop_footer
      %s25 = sadd.s32 1, %s21
    $region7: #{color_network_forward.1} parent=1 // loop_footer_branch
      %20 = sbr.rel target = $region3
    $region8: #{color_network_forward.1} parent=1 // loop_exit
      _
    %1880 = vsyncpa [#allocation3], 1
    %s1881 = scalar_lea.sflag [#allocation3], 1
    %1882 = vsyncpa %s1881, 1
    %1883 = vsyncpa [#allocation5], 1

</llo_original>
